<compile_context>
chip_gen: v7x
topology: tpu7x:2x2x1
jax: 0.10.0
libtpu: 0.0.40
codegen_flags: <defaults>
</compile_context>

<pallas_src>
import functools
import numpy as np
import jax
import jax.numpy as jnp
from jax import lax
from jax.experimental import pallas as pl
from jax.experimental.pallas import tpu as pltpu


def _setup_kernel(k):
    k = np.asarray(k, dtype=np.float32)
    if k.ndim == 1:
        k = np.outer(k, k)
    k /= k.sum()
    assert k.ndim == 2 and k.shape[0] == k.shape[1]
    return k


# --------------------------------------------------------------------------
# Kernel 1: depthwise FIR blur (NHWC, channels on lanes).
# --------------------------------------------------------------------------
def _fir_kernel(xp_ref, o_ref, *, taps, H, W):
    # xp_ref: (1, H+kf-1, W+kf-1, TC)   o_ref: (1, H, W, TC)
    kf = len(taps)
    x = xp_ref[0].astype(jnp.float32)
    acc = taps[0][0] * x[0:H, 0:W, :]
    for dh in range(kf):
        for dw in range(kf):
            if dh == 0 and dw == 0:
                continue
            acc = acc + taps[dh][dw] * x[dh:dh + H, dw:dw + W, :]
    o_ref[0] = acc.astype(o_ref.dtype)


def _fir_filter(x_nhwc, k2d, pad0):
    N, H, W, C = x_nhwc.shape
    kf = int(k2d.shape[0])
    pad_hi = kf - 1 - pad0
    assert pad_hi >= 0
    # pad top/left = pad0, bottom/right = kf-1-pad0 (bakes in the nearest-crop)
    xp = jnp.pad(x_nhwc, ((0, 0), (pad0, pad_hi), (pad0, pad_hi), (0, 0)))

    TC = 128 if (C % 128 == 0) else C
    taps = tuple(tuple(float(v) for v in row) for row in np.asarray(k2d))
    kern = functools.partial(_fir_kernel, taps=taps, H=H, W=W)

    itemsize = x_nhwc.dtype.itemsize
    blk = ((H + kf - 1) * (W + kf - 1) + H * W) * TC * itemsize
    vmem_limit = int(min(32 * 1024 * 1024, max(4 * 1024 * 1024, 4 * blk)))

    return pl.pallas_call(
        kern,
        out_shape=jax.ShapeDtypeStruct((N, H, W, C), x_nhwc.dtype),
        grid_spec=pltpu.PrefetchScalarGridSpec(
            num_scalar_prefetch=0,
            grid=(N, C // TC),
            in_specs=[pl.BlockSpec((1, H + kf - 1, W + kf - 1, TC),
                                   lambda n, c: (n, 0, 0, c))],
            out_specs=pl.BlockSpec((1, H, W, TC), lambda n, c: (n, 0, 0, c)),
        ),
        compiler_params=pltpu.CompilerParams(
            dimension_semantics=("parallel", "parallel"),
            vmem_limit_bytes=vmem_limit),
    )(xp)


# --------------------------------------------------------------------------
# Kernel 2: stride-2 conv as 9 MXU matmuls + fused bias + leaky_relu*sqrt(2).
# --------------------------------------------------------------------------
def _conv_kernel(ysd_ref, w_ref, b_ref, o_ref, *, ks, Ho, Wo, C, alpha, scale):
    # ysd_ref: (1, 4, H2, W2, C)  phase = (row parity)*2 + (col parity)
    # w_ref:   (ks*ks, C, TCO)    b_ref: (1, TCO)    o_ref: (1, Ho, Wo, TCO)
    tco = o_ref.shape[-1]
    acc = jnp.zeros((Ho * Wo, tco), jnp.float32)
    for kh in range(ks):
        for kw in range(ks):
            ph = (kh % 2) * 2 + (kw % 2)
            tap = ysd_ref[0, ph, kh // 2:kh // 2 + Ho, kw // 2:kw // 2 + Wo, :]
            acc = acc + jnp.dot(tap.reshape(Ho * Wo, C), w_ref[kh * ks + kw],
                                preferred_element_type=jnp.float32)
    z = acc + b_ref[...]
    z = jnp.maximum(z, z * alpha) * scale     # leaky_relu(.,alpha)*sqrt(2), folded
    o_ref[0] = z.reshape(Ho, Wo, tco).astype(o_ref.dtype)


def _conv_bias_lrelu(y_nhwc, w_oihw, bias, *, stride, alpha, scale):
    N, H, W, C = y_nhwc.shape
    Co, Ci, ks, _ = w_oihw.shape
    assert Ci == C and ks % 2 == 1
    assert stride == 2, "TODO(synk): only factor=2 implemented"
    assert H % 2 == 0 and W % 2 == 0
    Ho, Wo = H // 2, W // 2
    pad = ks // 2
    Hp, Wp = H + 2 * pad, W + 2 * pad          # = H+ks-1, even
    H2, W2 = Hp // 2, Wp // 2

    yp = jnp.pad(y_nhwc, ((0, 0), (pad, pad), (pad, pad), (0, 0)))
    # stride-2 space-to-depth so the kernel only needs contiguous static slices
    ysd = yp.reshape(N, H2, 2, W2, 2, C).transpose(0, 2, 4, 1, 3, 5)
    ysd = ysd.reshape(N, 4, H2, W2, C)

    # (Co, Ci, kh, kw) -> (ks*ks, Ci, Co), activation dtype feeds the MXU
    w_mat = jnp.transpose(w_oihw, (2, 3, 1, 0)).reshape(ks * ks, Ci, Co)
    w_mat = w_mat.astype(y_nhwc.dtype)
    b_row = bias.reshape(1, Co).astype(jnp.float32)

    TCO = 128 if (Co % 128 == 0) else Co
    kern = functools.partial(_conv_kernel, ks=ks, Ho=Ho, Wo=Wo, C=C,
                             alpha=float(alpha), scale=float(scale))

    itemsize = y_nhwc.dtype.itemsize
    blk = (4 * H2 * W2 * C + ks * ks * C * TCO + Ho * Wo * TCO) * itemsize
    vmem_limit = int(min(32 * 1024 * 1024, max(4 * 1024 * 1024, 4 * blk)))

    return pl.pallas_call(
        kern,
        out_shape=jax.ShapeDtypeStruct((N, Ho, Wo, Co), y_nhwc.dtype),
        grid_spec=pltpu.PrefetchScalarGridSpec(
            num_scalar_prefetch=0,
            grid=(N, Co // TCO),
            in_specs=[
                pl.BlockSpec((1, 4, H2, W2, C), lambda n, j: (n, 0, 0, 0, 0)),
                pl.BlockSpec((ks * ks, C, TCO), lambda n, j: (0, 0, j)),
                pl.BlockSpec((1, TCO), lambda n, j: (0, j)),
            ],
            out_specs=pl.BlockSpec((1, Ho, Wo, TCO), lambda n, j: (n, 0, 0, j)),
        ),
        compiler_params=pltpu.CompilerParams(
            dimension_semantics=("parallel", "parallel"),
            vmem_limit_bytes=vmem_limit),
    )(ysd, w_mat, b_row)


# --------------------------------------------------------------------------
# Module wrapper (mirrors the PyTorch __init__ / forward semantics).
# --------------------------------------------------------------------------
class ConvDownsample2d:
    def __init__(self, kernel_size, input_channels, output_channels,
                 k=(1, 3, 3, 1), factor=2, gain=1, use_wscale=True, lrmul=1,
                 bias=True, *, key):
        assert isinstance(factor, int) and factor >= 1
        assert kernel_size >= 1 and kernel_size % 2 == 1
        he_std = gain / (input_channels * output_channels
                         * kernel_size * kernel_size) ** 0.5
        if use_wscale:
            init_std = 1.0 / lrmul
            self.w_lrmul = he_std * lrmul
        else:
            init_std = he_std / lrmul
            self.w_lrmul = lrmul
        kw_, kb_ = jax.random.split(key)
        self.weight = jax.random.normal(
            kw_, (output_channels, input_channels, kernel_size, kernel_size),
            dtype=jnp.float32) * init_std
        if bias:
            # torch init is zeros(Co); use a nonzero bias so the path is tested.
            self.bias = jax.random.normal(kb_, (output_channels,), jnp.float32)
            self.b_lrmul = lrmul
        else:
            self.bias = None
            self.b_lrmul = lrmul
        self.kernel_size = kernel_size
        self.factor = factor
        self.gain = gain
        self.k2d = _setup_kernel(list(k)) * gain          # (kf, kf) numpy, fixed
        kf = self.k2d.shape[-1]
        self.p = kf - factor + (kernel_size - 1)
        self.pad0 = (self.p + 1) // 2
        self.pad1 = self.p // 2

    def __call__(self, x):
        N, C, H, W = x.shape
        kf = self.k2d.shape[0]
        # Torch forward nearest-resizes the FIR output (Hc,Wc) back to (H,W);
        # for the supported configs that is an exact crop (baked into the pad).
        Hc = H + self.pad0 + self.pad1 - kf + 1
        assert Hc in (H, H + 1), \
            "TODO(synk): generic nearest-resize FIR path not implemented"

        x_nhwc = jnp.transpose(x, (0, 2, 3, 1))                      # NHWC
        y = _fir_filter(x_nhwc, self.k2d, self.pad0)                 # (N,H,W,C)

        w_eff = self.weight * self.w_lrmul
        if self.bias is not None:
            b_eff = self.bias * self.b_lrmul
        else:
            b_eff = jnp.zeros((self.weight.shape[0],), jnp.float32)
        out = _conv_bias_lrelu(y, w_eff, b_eff, stride=self.factor,
                               alpha=0.2, scale=float(np.sqrt(2.0)))
        return jnp.transpose(out, (0, 3, 1, 2))                      # NCHW


# --------------------------------------------------------------------------
# Pure-JAX reference mirroring the PyTorch forward, for verification.
# --------------------------------------------------------------------------
def reference_forward(module, x):
    N, C, H, W = x.shape
    k2d = jnp.asarray(module.k2d)
    y = x.reshape(N * C, 1, H, W)
    y = jnp.pad(y, ((0, 0), (0, 0),
                    (module.pad0, module.pad1), (module.pad0, module.pad1)))
    y = lax.conv_general_dilated(y, k2d[None, None], (1, 1), 'VALID',
                                 dimension_numbers=('NCHW', 'OIHW', 'NCHW'))
    y = y[:, :, :H, :W]                    # nearest-resize == crop here
    y = y.reshape(N, C, H, W)
    pad = module.kernel_size // 2
    out = lax.conv_general_dilated(y, module.weight * module.w_lrmul,
                                   (module.factor, module.factor),
                                   [(pad, pad), (pad, pad)],
                                   dimension_numbers=('NCHW', 'OIHW', 'NCHW'))
    out = out + (module.bias * module.b_lrmul)[None, :, None, None]
    out = jnp.where(out >= 0, out, 0.2 * out) * float(np.sqrt(2.0))
    return out


if __name__ == "__main__":
    key = jax.random.PRNGKey(0)
    kx, kmod = jax.random.split(key)

    N, Cin, Cout, H, W = 2, 4, 4, 16, 16
    x = jax.random.normal(kx, (N, Cin, H, W), dtype=jnp.float32)

    mod = ConvDownsample2d(kernel_size=3, input_channels=Cin,
                           output_channels=Cout, key=kmod)

    y = mod(x)
    y = jax.block_until_ready(y)
    assert y.shape == (N, Cout, H // 2, W // 2)

    ref = reference_forward(mod, x)
    np.testing.assert_allclose(np.asarray(y), np.asarray(ref),
                               rtol=2e-5, atol=2e-5)
    print("KERNEL_OK")
</pallas_src>

<mosaic_0001>
module attributes {stable_mosaic.version = 11 : i64} {
  func.func @_fir_kernel(%arg0: i32, %arg1: i32, %arg2: memref<1x19x19x4xf32, #tpu.memory_space<vmem>>, %arg3: memref<1x16x16x4xf32, #tpu.memory_space<vmem>>) attributes {dimension_semantics = [#tpu.dimension_semantics<parallel>, #tpu.dimension_semantics<parallel>], iteration_bounds = array<i64: 2, 1>, scalar_prefetch = 0 : i64, scratch_operands = 0 : i64, tpu.core_type = #tpu.core_type<tc>, window_params = [{transform_indices = @transform_0, window_bounds = array<i64: 1, 19, 19, 4>}, {transform_indices = @transform_1, window_bounds = array<i64: 1, 16, 16, 4>}]} {
    %c0 = arith.constant 0 : index
    %c0_0 = arith.constant 0 : index
    %c0_1 = arith.constant 0 : index
    %c0_2 = arith.constant 0 : index
    %0 = vector.load %arg2[%c0, %c0_0, %c0_1, %c0_2] : memref<1x19x19x4xf32, #tpu.memory_space<vmem>>, vector<1x19x19x4xf32>
    %1 = vector.shape_cast %0 : vector<1x19x19x4xf32> to vector<19x19x4xf32>
    %2 = vector.extract_strided_slice %1 {offsets = [0, 0, 0], sizes = [16, 16, 4], strides = [1, 1, 1]} : vector<19x19x4xf32> to vector<16x16x4xf32>
    %cst = arith.constant 1.562500e-02 : f32
    %3 = vector.broadcast %cst : f32 to vector<16x16x4xf32>
    %4 = arith.mulf %3, %2 : vector<16x16x4xf32>
    %5 = vector.extract_strided_slice %1 {offsets = [0, 1, 0], sizes = [16, 16, 4], strides = [1, 1, 1]} : vector<19x19x4xf32> to vector<16x16x4xf32>
    %cst_3 = arith.constant 4.687500e-02 : f32
    %6 = vector.broadcast %cst_3 : f32 to vector<16x16x4xf32>
    %7 = arith.mulf %6, %5 : vector<16x16x4xf32>
    %8 = arith.addf %4, %7 : vector<16x16x4xf32>
    %9 = vector.extract_strided_slice %1 {offsets = [0, 2, 0], sizes = [16, 16, 4], strides = [1, 1, 1]} : vector<19x19x4xf32> to vector<16x16x4xf32>
    %cst_4 = arith.constant 4.687500e-02 : f32
    %10 = vector.broadcast %cst_4 : f32 to vector<16x16x4xf32>
    %11 = arith.mulf %10, %9 : vector<16x16x4xf32>
    %12 = arith.addf %8, %11 : vector<16x16x4xf32>
    %13 = vector.extract_strided_slice %1 {offsets = [0, 3, 0], sizes = [16, 16, 4], strides = [1, 1, 1]} : vector<19x19x4xf32> to vector<16x16x4xf32>
    %cst_5 = arith.constant 1.562500e-02 : f32
    %14 = vector.broadcast %cst_5 : f32 to vector<16x16x4xf32>
    %15 = arith.mulf %14, %13 : vector<16x16x4xf32>
    %16 = arith.addf %12, %15 : vector<16x16x4xf32>
    %17 = vector.extract_strided_slice %1 {offsets = [1, 0, 0], sizes = [16, 16, 4], strides = [1, 1, 1]} : vector<19x19x4xf32> to vector<16x16x4xf32>
    %cst_6 = arith.constant 4.687500e-02 : f32
    %18 = vector.broadcast %cst_6 : f32 to vector<16x16x4xf32>
    %19 = arith.mulf %18, %17 : vector<16x16x4xf32>
    %20 = arith.addf %16, %19 : vector<16x16x4xf32>
    %21 = vector.extract_strided_slice %1 {offsets = [1, 1, 0], sizes = [16, 16, 4], strides = [1, 1, 1]} : vector<19x19x4xf32> to vector<16x16x4xf32>
    %cst_7 = arith.constant 1.406250e-01 : f32
    %22 = vector.broadcast %cst_7 : f32 to vector<16x16x4xf32>
    %23 = arith.mulf %22, %21 : vector<16x16x4xf32>
    %24 = arith.addf %20, %23 : vector<16x16x4xf32>
    %25 = vector.extract_strided_slice %1 {offsets = [1, 2, 0], sizes = [16, 16, 4], strides = [1, 1, 1]} : vector<19x19x4xf32> to vector<16x16x4xf32>
    %cst_8 = arith.constant 1.406250e-01 : f32
    %26 = vector.broadcast %cst_8 : f32 to vector<16x16x4xf32>
    %27 = arith.mulf %26, %25 : vector<16x16x4xf32>
    %28 = arith.addf %24, %27 : vector<16x16x4xf32>
    %29 = vector.extract_strided_slice %1 {offsets = [1, 3, 0], sizes = [16, 16, 4], strides = [1, 1, 1]} : vector<19x19x4xf32> to vector<16x16x4xf32>
    %cst_9 = arith.constant 4.687500e-02 : f32
    %30 = vector.broadcast %cst_9 : f32 to vector<16x16x4xf32>
    %31 = arith.mulf %30, %29 : vector<16x16x4xf32>
    %32 = arith.addf %28, %31 : vector<16x16x4xf32>
    %33 = vector.extract_strided_slice %1 {offsets = [2, 0, 0], sizes = [16, 16, 4], strides = [1, 1, 1]} : vector<19x19x4xf32> to vector<16x16x4xf32>
    %cst_10 = arith.constant 4.687500e-02 : f32
    %34 = vector.broadcast %cst_10 : f32 to vector<16x16x4xf32>
    %35 = arith.mulf %34, %33 : vector<16x16x4xf32>
    %36 = arith.addf %32, %35 : vector<16x16x4xf32>
    %37 = vector.extract_strided_slice %1 {offsets = [2, 1, 0], sizes = [16, 16, 4], strides = [1, 1, 1]} : vector<19x19x4xf32> to vector<16x16x4xf32>
    %cst_11 = arith.constant 1.406250e-01 : f32
    %38 = vector.broadcast %cst_11 : f32 to vector<16x16x4xf32>
    %39 = arith.mulf %38, %37 : vector<16x16x4xf32>
    %40 = arith.addf %36, %39 : vector<16x16x4xf32>
    %41 = vector.extract_strided_slice %1 {offsets = [2, 2, 0], sizes = [16, 16, 4], strides = [1, 1, 1]} : vector<19x19x4xf32> to vector<16x16x4xf32>
    %cst_12 = arith.constant 1.406250e-01 : f32
    %42 = vector.broadcast %cst_12 : f32 to vector<16x16x4xf32>
    %43 = arith.mulf %42, %41 : vector<16x16x4xf32>
    %44 = arith.addf %40, %43 : vector<16x16x4xf32>
    %45 = vector.extract_strided_slice %1 {offsets = [2, 3, 0], sizes = [16, 16, 4], strides = [1, 1, 1]} : vector<19x19x4xf32> to vector<16x16x4xf32>
    %cst_13 = arith.constant 4.687500e-02 : f32
    %46 = vector.broadcast %cst_13 : f32 to vector<16x16x4xf32>
    %47 = arith.mulf %46, %45 : vector<16x16x4xf32>
    %48 = arith.addf %44, %47 : vector<16x16x4xf32>
    %49 = vector.extract_strided_slice %1 {offsets = [3, 0, 0], sizes = [16, 16, 4], strides = [1, 1, 1]} : vector<19x19x4xf32> to vector<16x16x4xf32>
    %cst_14 = arith.constant 1.562500e-02 : f32
    %50 = vector.broadcast %cst_14 : f32 to vector<16x16x4xf32>
    %51 = arith.mulf %50, %49 : vector<16x16x4xf32>
    %52 = arith.addf %48, %51 : vector<16x16x4xf32>
    %53 = vector.extract_strided_slice %1 {offsets = [3, 1, 0], sizes = [16, 16, 4], strides = [1, 1, 1]} : vector<19x19x4xf32> to vector<16x16x4xf32>
    %cst_15 = arith.constant 4.687500e-02 : f32
    %54 = vector.broadcast %cst_15 : f32 to vector<16x16x4xf32>
    %55 = arith.mulf %54, %53 : vector<16x16x4xf32>
    %56 = arith.addf %52, %55 : vector<16x16x4xf32>
    %57 = vector.extract_strided_slice %1 {offsets = [3, 2, 0], sizes = [16, 16, 4], strides = [1, 1, 1]} : vector<19x19x4xf32> to vector<16x16x4xf32>
    %cst_16 = arith.constant 4.687500e-02 : f32
    %58 = vector.broadcast %cst_16 : f32 to vector<16x16x4xf32>
    %59 = arith.mulf %58, %57 : vector<16x16x4xf32>
    %60 = arith.addf %56, %59 : vector<16x16x4xf32>
    %61 = vector.extract_strided_slice %1 {offsets = [3, 3, 0], sizes = [16, 16, 4], strides = [1, 1, 1]} : vector<19x19x4xf32> to vector<16x16x4xf32>
    %cst_17 = arith.constant 1.562500e-02 : f32
    %62 = vector.broadcast %cst_17 : f32 to vector<16x16x4xf32>
    %63 = arith.mulf %62, %61 : vector<16x16x4xf32>
    %64 = arith.addf %60, %63 : vector<16x16x4xf32>
    %c0_18 = arith.constant 0 : index
    %c0_19 = arith.constant 0 : index
    %c0_20 = arith.constant 0 : index
    %c0_21 = arith.constant 0 : index
    %65 = vector.load %arg3[%c0_18, %c0_19, %c0_20, %c0_21] : memref<1x16x16x4xf32, #tpu.memory_space<vmem>>, vector<1x16x16x4xf32>
    %66 = vector.shape_cast %65 : vector<1x16x16x4xf32> to vector<16x16x4xf32>
    %67 = vector.shape_cast %64 : vector<16x16x4xf32> to vector<1x16x16x4xf32>
    tpu.vector_store %arg3[%c0_18, %c0_19, %c0_20, %c0_21], %67 {strides = array<i32>} : memref<1x16x16x4xf32, #tpu.memory_space<vmem>>, vector<1x16x16x4xf32>,
    return
  }
  func.func @transform_0(%arg0: i32, %arg1: i32) -> (i32, i32, i32, i32) {
    %c0_i32 = arith.constant 0 : i32
    %c0_i32_0 = arith.constant 0 : i32
    %c0_i32_1 = arith.constant 0 : i32
    return %arg0, %c0_i32, %c0_i32_0, %arg1 : i32, i32, i32, i32
  }
  func.func @transform_1(%arg0: i32, %arg1: i32) -> (i32, i32, i32, i32) {
    %c0_i32 = arith.constant 0 : i32
    %c0_i32_0 = arith.constant 0 : i32
    %c0_i32_1 = arith.constant 0 : i32
    return %arg0, %c0_i32, %c0_i32_0, %arg1 : i32, i32, i32, i32
  }
}

</mosaic_0001>

<llo_original>
// kernel: tpu_custom_call.1
$region0: #{tpu_custom_call.1}
  #allocation0 [shape = 'u32[]', space=smem, size = 0x4, offset = 0x4, fixed_abs, tag = 'smem constant byte address 0x4 - core index']
  #allocation1 [shape = 'u32[144,128]{1,0:T(1,128)}', space=vmem, size = 0x12000, scoped, tag = 'internal scratch']
  %s0 = inlined_call_operand.vmem [shape: f32[2,19,19,4], index: 0, kind: input, shape index: {}]
  %s1 = inlined_call_operand.vmem [shape: f32[2,16,16,4], index: 1, kind: output, shape index: {}]
  %s2 = sld [smem:[#allocation0]]
  $region37: #{tpu_custom_call.1} parent=0
    _
  %s4 = ssub.s32 1, %s2
  %s5 = scalar_select 0, %s4, %s2
  loop: start=0, step=1, limit=4
  $region2: #{tpu_custom_call.1} parent=0 // loop_pre_header
    _
  $region3: #{tpu_custom_call.1} parent=0 // loop_header
    %s7 = sphi 0, %s11
    %p8 = scmp.ge.s32.totalorder %s7, 4
    %s14 = sphi 0, %s26
    %s15 = sphi 0, %s22
    %s16 = sphi 0, %s14
    %s17 = sphi 0, %s15
    %s18 = sphi 0, %s16
    %s19 = sphi 0, %s17
    %s31 = sphi 0, %s33
    %s34 = sphi 0, %s31
    %s35 = sphi 0, %s34
    %s51 = sphi 0, %s35
    %s59 = sphi 0, %s61
    %s62 = sphi 0, %s59
    %s63 = sphi 0, %s62
    %s79 = sphi 0, %s63
  $region4: #{tpu_custom_call.1} parent=0 // loop_header_branch
    %10 = sbr.rel (%p8) target = $region8
  $region5: #{tpu_custom_call.1} parent=0 // loop_body
    %s12 = ssub.s32 %s7, 1
    %s13 = ssub.s32 %s7, 2
    %s20 = sadd.s32 1, %s15
    %p21 = scmp.ge.s32.totalorder %s20, 1
    %s22 = scalar_select %p21, 0, %s20
    %s23 = sadd.s32 1, %s14
    %s24 = scalar_select %p21, %s23, %s14
    %p25 = scmp.ge.s32.totalorder %s24, 2
    %s26 = scalar_select %p25, 0, %s24
    %s27 = ssub.s32 %s14, %s26
    %s28 = ssub.s32 %s15, %s22
    %s29 = sor.u32 %s27, %s28
    %p30 = scmp.eq.s32.totalorder %s29, 0
    %s32 = sadd.s32 %s31, 1
    %s33 = scalar_select %p30, %s31, %s32
    %p36 = pneg %p30
    %p37 = scmp.eq.s32.totalorder %s7, 1
    %p38 = por %p36, %p37
    %p39 = scmp.ne.s32.totalorder %s31, %s34
    %p40 = scmp.eq.s32.totalorder %s7, 0
    %p41 = por %p39, %p40
    %p42 = scmp.ne.s32.totalorder %s31, %s34
    %p43 = scmp.eq.s32.totalorder %s12, 1
    %p44 = por %p42, %p43
    %p45 = scmp.ne.s32.totalorder %s34, %s35
    %p46 = scmp.eq.s32.totalorder %s12, 0
    %p47 = por %p45, %p46
    %p48 = scmp.ne.s32.totalorder %s34, %s35
    %p49 = scmp.eq.s32.totalorder %s13, 1
    %p50 = por %p48, %p49
    %p52 = scmp.ne.s32.totalorder %s35, %s51
    %p53 = scmp.eq.s32.totalorder %s13, 0
    %p54 = por %p52, %p53
    %s55 = ssub.s32 %s14, %s26
    %s56 = ssub.s32 %s15, %s22
    %s57 = sor.u32 %s55, %s56
    %p58 = scmp.eq.s32.totalorder %s57, 0
    %s60 = sadd.s32 %s59, 1
    %s61 = scalar_select %p58, %s59, %s60
    %p64 = pneg %p58
    %p65 = scmp.eq.s32.totalorder %s7, 1
    %p66 = por %p64, %p65
    %p67 = scmp.ne.s32.totalorder %s59, %s62
    %p68 = scmp.eq.s32.totalorder %s7, 0
    %p69 = por %p67, %p68
    %p70 = scmp.ne.s32.totalorder %s59, %s62
    %p71 = scmp.eq.s32.totalorder %s12, 1
    %p72 = por %p70, %p71
    %p73 = scmp.ne.s32.totalorder %s62, %s63
    %p74 = scmp.eq.s32.totalorder %s12, 0
    %p75 = por %p73, %p74
    %p76 = scmp.ne.s32.totalorder %s62, %s63
    %p77 = scmp.eq.s32.totalorder %s13, 1
    %p78 = por %p76, %p77
    %p80 = scmp.ne.s32.totalorder %s63, %s79
    %p81 = scmp.eq.s32.totalorder %s13, 0
    %p82 = por %p80, %p81
    %p83 = scmp.le.s32.totalorder 1, %s7
    %p84 = scmp.lt.s32.totalorder %s7, 3
    %p85 = pnand %p83, %p84
    %p86 = pneg %p85
    // Predicated region
    $region9: #{tpu_custom_call.1} parent=5 // pred_check
      _
    $region10: #{tpu_custom_call.1} parent=5 // pred_check_branch
      %88 = sbr.rel (%p85) target = $region12
    $region11: #{tpu_custom_call.1} parent=5 // pred_region
      %s89 = ssub.s32 %s7, 1
    $region12: #{tpu_custom_call.1} parent=5 // pred_fallthru
      _
    %p90 = scmp.lt.s32.totalorder %s7, 2
    // Predicated region
    $region13: #{tpu_custom_call.1} parent=5 // pred_check
      %p91 = pneg %p90
    $region14: #{tpu_custom_call.1} parent=5 // pred_check_branch
      %93 = sbr.rel (%p91) target = $region16
    $region15: #{tpu_custom_call.1} parent=5 // pred_region
      // Predicated region
      $region17: #{tpu_custom_call.1} parent=15 // pred_check
        %p94 = pneg %p41
      $region18: #{tpu_custom_call.1} parent=15 // pred_check_branch
        %96 = sbr.rel (%p94) target = $region20
      $region19: #{tpu_custom_call.1} parent=15 // pred_region
        %p97 = scmp.lt.s32.totalorder %s14, 1
        %s98 = scalar_select %p97, %s14, 1
        %p99 = scmp.lt.s32.totalorder %s15, 0
        %s100 = scalar_select %p99, %s15, 0
        %s101 = smul.addr %s98, 57
        %s102 = sadd.s32 %s100, %s101
        %s103 = smul.addr %s102, 8
        %s104 = scalar_lea.vmem %s0, %s103
      $region20: #{tpu_custom_call.1} parent=15 // pred_fallthru
        _
    $region16: #{tpu_custom_call.1} parent=5 // pred_fallthru
      _
    %p105 = scmp.le.s32.totalorder 1, %s7
    %p106 = scmp.lt.s32.totalorder %s7, 3
    %p107 = pnand %p105, %p106
    %p108 = pneg %p107
    // Predicated region
    $region21: #{tpu_custom_call.1} parent=5 // pred_check
      _
    $region22: #{tpu_custom_call.1} parent=5 // pred_check_branch
      %110 = sbr.rel (%p107) target = $region24
    $region23: #{tpu_custom_call.1} parent=5 // pred_region
      %s111 = ssub.s32 %s7, 1
      %p112 = scmp.lt.s32.totalorder %s16, 1
      %s113 = scalar_select %p112, %s16, 1
      %p114 = scmp.lt.s32.totalorder %s17, 0
      %s115 = scalar_select %p114, %s17, 0
      %s116 = smul.addr %s113, 57
      %s117 = sadd.s32 %s115, %s116
      %s118 = smul.addr %s117, 8
      %s119 = scalar_lea.vmem %s0, %s118
      %p120 = pneg %p47
      %p121 = pneg %p44
      %p122 = pneg %p75
      %p123 = pneg %p72
      %p124 = scmp.lt.s32.totalorder %s16, 1
      %s125 = scalar_select %p124, %s16, 1
      %p126 = scmp.lt.s32.totalorder %s17, 0
      %s127 = scalar_select %p126, %s17, 0
      %s128 = smul.addr %s125, 32
      %s129 = sadd.s32 %s127, %s128
      %s130 = smul.addr %s129, 8
      %s131 = scalar_lea.vmem %s1, %s130
      %p132 = scmp.lt.s32.totalorder %s16, 1
      %s133 = scalar_select %p132, %s16, 1
      %p134 = scmp.lt.s32.totalorder %s17, 0
      %s135 = scalar_select %p134, %s17, 0
      %s136 = smul.addr %s133, 57
      %s137 = sadd.s32 %s135, %s136
      %s138 = smul.addr %s137, 8
      %s139 = scalar_lea.vmem %s0, %s138
      %p140 = scmp.lt.s32.totalorder %s16, 1
      %s141 = scalar_select %p140, %s16, 1
      %p142 = scmp.lt.s32.totalorder %s17, 0
      %s143 = scalar_select %p142, %s17, 0
      %s144 = smul.addr %s141, 32
      %s145 = sadd.s32 %s143, %s144
      %s146 = smul.addr %s145, 8
      %s147 = scalar_lea.vmem %s1, %s146
      %v148 = vld [vmem:[%s139] sm:$0xff]
      %v149 = vld [vmem:[%s139 + $0x8] sm:$0xff]
      %v150 = vld [vmem:[%s139 + $0x10] sm:$0x7]
      %v151 = vld [vmem:[%s139 + $0x18] sm:$0xff]
      %v152 = vld [vmem:[%s139 + $0x20] sm:$0xff]
      %v153 = vld [vmem:[%s139 + $0x28] sm:$0x7]
      %v154 = vld [vmem:[%s139 + $0x30] sm:$0xff]
      %v155 = vld [vmem:[%s139 + $0x38] sm:$0xff]
      %v156 = vld [vmem:[%s139 + $0x40] sm:$0x7]
      %v157 = vld [vmem:[%s139 + $0x48] sm:$0xff]
      %v158 = vld [vmem:[%s139 + $0x50] sm:$0xff]
      %v159 = vld [vmem:[%s139 + $0x58] sm:$0x7]
      %v160 = vld [vmem:[%s139 + $0x60] sm:$0xff]
      %v161 = vld [vmem:[%s139 + $0x68] sm:$0xff]
      %v162 = vld [vmem:[%s139 + $0x70] sm:$0x7]
      %v163 = vld [vmem:[%s139 + $0x78] sm:$0xff]
      %v164 = vld [vmem:[%s139 + $0x80] sm:$0xff]
      %v165 = vld [vmem:[%s139 + $0x88] sm:$0x7]
      %v166 = vld [vmem:[%s139 + $0x90] sm:$0xff]
      %v167 = vld [vmem:[%s139 + $0x98] sm:$0xff]
      %v168 = vld [vmem:[%s139 + $0xa0] sm:$0x7]
      %v169 = vld [vmem:[%s139 + $0xa8] sm:$0xff]
      %v170 = vld [vmem:[%s139 + $0xb0] sm:$0xff]
      %v171 = vld [vmem:[%s139 + $0xb8] sm:$0x7]
      %v172 = vld [vmem:[%s139 + $0xc0] sm:$0xff]
      %v173 = vld [vmem:[%s139 + $0xc8] sm:$0xff]
      %v174 = vld [vmem:[%s139 + $0xd0] sm:$0x7]
      %v175 = vld [vmem:[%s139 + $0xd8] sm:$0xff]
      %v176 = vld [vmem:[%s139 + $0xe0] sm:$0xff]
      %v177 = vld [vmem:[%s139 + $0xe8] sm:$0x7]
      %v178 = vld [vmem:[%s139 + $0xf0] sm:$0xff]
      %v179 = vld [vmem:[%s139 + $0xf8] sm:$0xff]
      %v180 = vld [vmem:[%s139 + $0x100] sm:$0x7]
      %v181 = vld [vmem:[%s139 + $0x108] sm:$0xff]
      %v182 = vld [vmem:[%s139 + $0x110] sm:$0xff]
      %v183 = vld [vmem:[%s139 + $0x118] sm:$0x7]
      %v184 = vld [vmem:[%s139 + $0x120] sm:$0xff]
      %v185 = vld [vmem:[%s139 + $0x128] sm:$0xff]
      %v186 = vld [vmem:[%s139 + $0x130] sm:$0x7]
      %v187 = vld [vmem:[%s139 + $0x138] sm:$0xff]
      %v188 = vld [vmem:[%s139 + $0x140] sm:$0xff]
      %v189 = vld [vmem:[%s139 + $0x148] sm:$0x7]
      %v190 = vld [vmem:[%s139 + $0x150] sm:$0xff]
      %v191 = vld [vmem:[%s139 + $0x158] sm:$0xff]
      %v192 = vld [vmem:[%s139 + $0x160] sm:$0x7]
      %v193 = vld [vmem:[%s139 + $0x168] sm:$0xff]
      %v194 = vld [vmem:[%s139 + $0x170] sm:$0xff]
      %v195 = vld [vmem:[%s139 + $0x178] sm:$0x7]
      %v196 = vld [vmem:[%s139 + $0x180] sm:$0xff]
      %v197 = vld [vmem:[%s139 + $0x188] sm:$0xff]
      %v198 = vld [vmem:[%s139 + $0x190] sm:$0x7]
      %v199 = vld [vmem:[%s139 + $0x198] sm:$0xff]
      %v200 = vld [vmem:[%s139 + $0x1a0] sm:$0xff]
      %v201 = vld [vmem:[%s139 + $0x1a8] sm:$0x7]
      %v202 = vld [vmem:[%s139 + $0x1b0] sm:$0xff]
      %v203 = vld [vmem:[%s139 + $0x1b8] sm:$0xff]
      %v204 = vld [vmem:[%s139 + $0x1c0] sm:$0x7]
      %v205 = vmul.f32 %v148, 0.015625
      %v206 = vmul.f32 %v149, 0.015625
      %v207 = vmul.f32 %v151, 0.015625
      %v208 = vmul.f32 %v152, 0.015625
      %v209 = vmul.f32 %v154, 0.015625
      %v210 = vmul.f32 %v155, 0.015625
      %v211 = vmul.f32 %v157, 0.015625
      %v212 = vmul.f32 %v158, 0.015625
      %v213 = vmul.f32 %v160, 0.015625
      %v214 = vmul.f32 %v161, 0.015625
      %v215 = vmul.f32 %v163, 0.015625
      %v216 = vmul.f32 %v164, 0.015625
      %v217 = vmul.f32 %v166, 0.015625
      %v218 = vmul.f32 %v167, 0.015625
      %v219 = vmul.f32 %v169, 0.015625
      %v220 = vmul.f32 %v170, 0.015625
      %v221 = vmul.f32 %v172, 0.015625
      %v222 = vmul.f32 %v173, 0.015625
      %v223 = vmul.f32 %v175, 0.015625
      %v224 = vmul.f32 %v176, 0.015625
      %v225 = vmul.f32 %v178, 0.015625
      %v226 = vmul.f32 %v179, 0.015625
      %v227 = vmul.f32 %v181, 0.015625
      %v228 = vmul.f32 %v182, 0.015625
      %v229 = vmul.f32 %v184, 0.015625
      %v230 = vmul.f32 %v185, 0.015625
      %v231 = vmul.f32 %v187, 0.015625
      %v232 = vmul.f32 %v188, 0.015625
      %v233 = vmul.f32 %v190, 0.015625
      %v234 = vmul.f32 %v191, 0.015625
      %v235 = vmul.f32 %v193, 0.015625
      %v236 = vmul.f32 %v194, 0.015625
      %v237 = vmul.f32 %v148, 0.046875
      %v238 = vmul.f32 %v149, 0.046875
      %v239 = vmul.f32 %v150, 0.046875
      %v240 = vmul.f32 %v151, 0.046875
      %v241 = vmul.f32 %v152, 0.046875
      %v242 = vmul.f32 %v153, 0.046875
      %v243 = vmul.f32 %v154, 0.046875
      %v244 = vmul.f32 %v155, 0.046875
      %v245 = vmul.f32 %v156, 0.046875
      %v246 = vmul.f32 %v157, 0.046875
      %v247 = vmul.f32 %v158, 0.046875
      %v248 = vmul.f32 %v159, 0.046875
      %v249 = vmul.f32 %v160, 0.046875
      %v250 = vmul.f32 %v161, 0.046875
      %v251 = vmul.f32 %v162, 0.046875
      %v252 = vmul.f32 %v163, 0.046875
      %v253 = vmul.f32 %v164, 0.046875
      %v254 = vmul.f32 %v165, 0.046875
      %v255 = vmul.f32 %v166, 0.046875
      %v256 = vmul.f32 %v167, 0.046875
      %v257 = vmul.f32 %v168, 0.046875
      %v258 = vmul.f32 %v169, 0.046875
      %v259 = vmul.f32 %v170, 0.046875
      %v260 = vmul.f32 %v171, 0.046875
      %v261 = vmul.f32 %v172, 0.046875
      %v262 = vmul.f32 %v173, 0.046875
      %v263 = vmul.f32 %v174, 0.046875
      %v264 = vmul.f32 %v175, 0.046875
      %v265 = vmul.f32 %v176, 0.046875
      %v266 = vmul.f32 %v177, 0.046875
      %v267 = vmul.f32 %v178, 0.046875
      %v268 = vmul.f32 %v179, 0.046875
      %v269 = vmul.f32 %v180, 0.046875
      %v270 = vmul.f32 %v181, 0.046875
      %v271 = vmul.f32 %v182, 0.046875
      %v272 = vmul.f32 %v183, 0.046875
      %v273 = vmul.f32 %v184, 0.046875
      %v274 = vmul.f32 %v185, 0.046875
      %v275 = vmul.f32 %v186, 0.046875
      %v276 = vmul.f32 %v187, 0.046875
      %v277 = vmul.f32 %v188, 0.046875
      %v278 = vmul.f32 %v189, 0.046875
      %v279 = vmul.f32 %v190, 0.046875
      %v280 = vmul.f32 %v191, 0.046875
      %v281 = vmul.f32 %v192, 0.046875
      %v282 = vmul.f32 %v193, 0.046875
      %v283 = vmul.f32 %v194, 0.046875
      %v284 = vmul.f32 %v195, 0.046875
      %vm333 = vcmask 1046528
      %v334 = vrot.slane %v237, 1
      %v335 = vrot.slane %v238, 1
      %v336 = vsel %vm333, %v334, %v335
      %v337 = vrot.slane %v239, 1
      %v338 = vsel %vm333, %v335, %v337
      %v339 = vrot.slane %v240, 1
      %v340 = vrot.slane %v241, 1
      %v341 = vsel %vm333, %v339, %v340
      %v342 = vrot.slane %v242, 1
      %v343 = vsel %vm333, %v340, %v342
      %v344 = vrot.slane %v243, 1
      %v345 = vrot.slane %v244, 1
      %v346 = vsel %vm333, %v344, %v345
      %v347 = vrot.slane %v245, 1
      %v348 = vsel %vm333, %v345, %v347
      %v349 = vrot.slane %v246, 1
      %v350 = vrot.slane %v247, 1
      %v351 = vsel %vm333, %v349, %v350
      %v352 = vrot.slane %v248, 1
      %v353 = vsel %vm333, %v350, %v352
      %v354 = vrot.slane %v249, 1
      %v355 = vrot.slane %v250, 1
      %v356 = vsel %vm333, %v354, %v355
      %v357 = vrot.slane %v251, 1
      %v358 = vsel %vm333, %v355, %v357
      %v359 = vrot.slane %v252, 1
      %v360 = vrot.slane %v253, 1
      %v361 = vsel %vm333, %v359, %v360
      %v362 = vrot.slane %v254, 1
      %v363 = vsel %vm333, %v360, %v362
      %v364 = vrot.slane %v255, 1
      %v365 = vrot.slane %v256, 1
      %v366 = vsel %vm333, %v364, %v365
      %v367 = vrot.slane %v257, 1
      %v368 = vsel %vm333, %v365, %v367
      %v369 = vrot.slane %v258, 1
      %v370 = vrot.slane %v259, 1
      %v371 = vsel %vm333, %v369, %v370
      %v372 = vrot.slane %v260, 1
      %v373 = vsel %vm333, %v370, %v372
      %v374 = vrot.slane %v261, 1
      %v375 = vrot.slane %v262, 1
      %v376 = vsel %vm333, %v374, %v375
      %v377 = vrot.slane %v263, 1
      %v378 = vsel %vm333, %v375, %v377
      %v379 = vrot.slane %v264, 1
      %v380 = vrot.slane %v265, 1
      %v381 = vsel %vm333, %v379, %v380
      %v382 = vrot.slane %v266, 1
      %v383 = vsel %vm333, %v380, %v382
      %v384 = vrot.slane %v267, 1
      %v385 = vrot.slane %v268, 1
      %v386 = vsel %vm333, %v384, %v385
      %v387 = vrot.slane %v269, 1
      %v388 = vsel %vm333, %v385, %v387
      %v389 = vrot.slane %v270, 1
      %v390 = vrot.slane %v271, 1
      %v391 = vsel %vm333, %v389, %v390
      %v392 = vrot.slane %v272, 1
      %v393 = vsel %vm333, %v390, %v392
      %v394 = vrot.slane %v273, 1
      %v395 = vrot.slane %v274, 1
      %v396 = vsel %vm333, %v394, %v395
      %v397 = vrot.slane %v275, 1
      %v398 = vsel %vm333, %v395, %v397
      %v399 = vrot.slane %v276, 1
      %v400 = vrot.slane %v277, 1
      %v401 = vsel %vm333, %v399, %v400
      %v402 = vrot.slane %v278, 1
      %v403 = vsel %vm333, %v400, %v402
      %v404 = vrot.slane %v279, 1
      %v405 = vrot.slane %v280, 1
      %v406 = vsel %vm333, %v404, %v405
      %v407 = vrot.slane %v281, 1
      %v408 = vsel %vm333, %v405, %v407
      %v409 = vrot.slane %v282, 1
      %v410 = vrot.slane %v283, 1
      %v411 = vsel %vm333, %v409, %v410
      %v412 = vrot.slane %v284, 1
      %v413 = vsel %vm333, %v410, %v412
      %v446 = vadd.f32 %v205, %v336
      %v447 = vadd.f32 %v206, %v338
      %v448 = vadd.f32 %v207, %v341
      %v449 = vadd.f32 %v208, %v343
      %v450 = vadd.f32 %v209, %v346
      %v451 = vadd.f32 %v210, %v348
      %v452 = vadd.f32 %v211, %v351
      %v453 = vadd.f32 %v212, %v353
      %v454 = vadd.f32 %v213, %v356
      %v455 = vadd.f32 %v214, %v358
      %v456 = vadd.f32 %v215, %v361
      %v457 = vadd.f32 %v216, %v363
      %v458 = vadd.f32 %v217, %v366
      %v459 = vadd.f32 %v218, %v368
      %v460 = vadd.f32 %v219, %v371
      %v461 = vadd.f32 %v220, %v373
      %v462 = vadd.f32 %v221, %v376
      %v463 = vadd.f32 %v222, %v378
      %v464 = vadd.f32 %v223, %v381
      %v465 = vadd.f32 %v224, %v383
      %v466 = vadd.f32 %v225, %v386
      %v467 = vadd.f32 %v226, %v388
      %v468 = vadd.f32 %v227, %v391
      %v469 = vadd.f32 %v228, %v393
      %v470 = vadd.f32 %v229, %v396
      %v471 = vadd.f32 %v230, %v398
      %v472 = vadd.f32 %v231, %v401
      %v473 = vadd.f32 %v232, %v403
      %v474 = vadd.f32 %v233, %v406
      %v475 = vadd.f32 %v234, %v408
      %v476 = vadd.f32 %v235, %v411
      %v477 = vadd.f32 %v236, %v413
      %vm478 = vcmask 1045504
      %v479 = vrot.slane %v237, 2
      %v480 = vrot.slane %v238, 2
      %v481 = vsel %vm478, %v479, %v480
      %v482 = vrot.slane %v239, 2
      %v483 = vsel %vm478, %v480, %v482
      %v484 = vrot.slane %v240, 2
      %v485 = vrot.slane %v241, 2
      %v486 = vsel %vm478, %v484, %v485
      %v487 = vrot.slane %v242, 2
      %v488 = vsel %vm478, %v485, %v487
      %v489 = vrot.slane %v243, 2
      %v490 = vrot.slane %v244, 2
      %v491 = vsel %vm478, %v489, %v490
      %v492 = vrot.slane %v245, 2
      %v493 = vsel %vm478, %v490, %v492
      %v494 = vrot.slane %v246, 2
      %v495 = vrot.slane %v247, 2
      %v496 = vsel %vm478, %v494, %v495
      %v497 = vrot.slane %v248, 2
      %v498 = vsel %vm478, %v495, %v497
      %v499 = vrot.slane %v249, 2
      %v500 = vrot.slane %v250, 2
      %v501 = vsel %vm478, %v499, %v500
      %v502 = vrot.slane %v251, 2
      %v503 = vsel %vm478, %v500, %v502
      %v504 = vrot.slane %v252, 2
      %v505 = vrot.slane %v253, 2
      %v506 = vsel %vm478, %v504, %v505
      %v507 = vrot.slane %v254, 2
      %v508 = vsel %vm478, %v505, %v507
      %v509 = vrot.slane %v255, 2
      %v510 = vrot.slane %v256, 2
      %v511 = vsel %vm478, %v509, %v510
      %v512 = vrot.slane %v257, 2
      %v513 = vsel %vm478, %v510, %v512
      %v514 = vrot.slane %v258, 2
      %v515 = vrot.slane %v259, 2
      %v516 = vsel %vm478, %v514, %v515
      %v517 = vrot.slane %v260, 2
      %v518 = vsel %vm478, %v515, %v517
      %v519 = vrot.slane %v261, 2
      %v520 = vrot.slane %v262, 2
      %v521 = vsel %vm478, %v519, %v520
      %v522 = vrot.slane %v263, 2
      %v523 = vsel %vm478, %v520, %v522
      %v524 = vrot.slane %v264, 2
      %v525 = vrot.slane %v265, 2
      %v526 = vsel %vm478, %v524, %v525
      %v527 = vrot.slane %v266, 2
      %v528 = vsel %vm478, %v525, %v527
      %v529 = vrot.slane %v267, 2
      %v530 = vrot.slane %v268, 2
      %v531 = vsel %vm478, %v529, %v530
      %v532 = vrot.slane %v269, 2
      %v533 = vsel %vm478, %v530, %v532
      %v534 = vrot.slane %v270, 2
      %v535 = vrot.slane %v271, 2
      %v536 = vsel %vm478, %v534, %v535
      %v537 = vrot.slane %v272, 2
      %v538 = vsel %vm478, %v535, %v537
      %v539 = vrot.slane %v273, 2
      %v540 = vrot.slane %v274, 2
      %v541 = vsel %vm478, %v539, %v540
      %v542 = vrot.slane %v275, 2
      %v543 = vsel %vm478, %v540, %v542
      %v544 = vrot.slane %v276, 2
      %v545 = vrot.slane %v277, 2
      %v546 = vsel %vm478, %v544, %v545
      %v547 = vrot.slane %v278, 2
      %v548 = vsel %vm478, %v545, %v547
      %v549 = vrot.slane %v279, 2
      %v550 = vrot.slane %v280, 2
      %v551 = vsel %vm478, %v549, %v550
      %v552 = vrot.slane %v281, 2
      %v553 = vsel %vm478, %v550, %v552
      %v554 = vrot.slane %v282, 2
      %v555 = vrot.slane %v283, 2
      %v556 = vsel %vm478, %v554, %v555
      %v557 = vrot.slane %v284, 2
      %v558 = vsel %vm478, %v555, %v557
      %v591 = vadd.f32 %v446, %v481
      %v592 = vadd.f32 %v447, %v483
      %v593 = vadd.f32 %v448, %v486
      %v594 = vadd.f32 %v449, %v488
      %v595 = vadd.f32 %v450, %v491
      %v596 = vadd.f32 %v451, %v493
      %v597 = vadd.f32 %v452, %v496
      %v598 = vadd.f32 %v453, %v498
      %v599 = vadd.f32 %v454, %v501
      %v600 = vadd.f32 %v455, %v503
      %v601 = vadd.f32 %v456, %v506
      %v602 = vadd.f32 %v457, %v508
      %v603 = vadd.f32 %v458, %v511
      %v604 = vadd.f32 %v459, %v513
      %v605 = vadd.f32 %v460, %v516
      %v606 = vadd.f32 %v461, %v518
      %v607 = vadd.f32 %v462, %v521
      %v608 = vadd.f32 %v463, %v523
      %v609 = vadd.f32 %v464, %v526
      %v610 = vadd.f32 %v465, %v528
      %v611 = vadd.f32 %v466, %v531
      %v612 = vadd.f32 %v467, %v533
      %v613 = vadd.f32 %v468, %v536
      %v614 = vadd.f32 %v469, %v538
      %v615 = vadd.f32 %v470, %v541
      %v616 = vadd.f32 %v471, %v543
      %v617 = vadd.f32 %v472, %v546
      %v618 = vadd.f32 %v473, %v548
      %v619 = vadd.f32 %v474, %v551
      %v620 = vadd.f32 %v475, %v553
      %v621 = vadd.f32 %v476, %v556
      %v622 = vadd.f32 %v477, %v558
      %v623 = vmul.f32 %v150, 0.015625
      %v624 = vmul.f32 %v153, 0.015625
      %v625 = vmul.f32 %v156, 0.015625
      %v626 = vmul.f32 %v159, 0.015625
      %v627 = vmul.f32 %v162, 0.015625
      %v628 = vmul.f32 %v165, 0.015625
      %v629 = vmul.f32 %v168, 0.015625
      %v630 = vmul.f32 %v171, 0.015625
      %v631 = vmul.f32 %v174, 0.015625
      %v632 = vmul.f32 %v177, 0.015625
      %v633 = vmul.f32 %v180, 0.015625
      %v634 = vmul.f32 %v183, 0.015625
      %v635 = vmul.f32 %v186, 0.015625
      %v636 = vmul.f32 %v189, 0.015625
      %v637 = vmul.f32 %v192, 0.015625
      %v638 = vmul.f32 %v195, 0.015625
      %vm687 = vcmask 1044480
      %v688 = vrot.slane %v205, 3
      %v689 = vrot.slane %v206, 3
      %v690 = vsel %vm687, %v688, %v689
      %v691 = vrot.slane %v623, 3
      %v692 = vsel %vm687, %v689, %v691
      %v693 = vrot.slane %v207, 3
      %v694 = vrot.slane %v208, 3
      %v695 = vsel %vm687, %v693, %v694
      %v696 = vrot.slane %v624, 3
      %v697 = vsel %vm687, %v694, %v696
      %v698 = vrot.slane %v209, 3
      %v699 = vrot.slane %v210, 3
      %v700 = vsel %vm687, %v698, %v699
      %v701 = vrot.slane %v625, 3
      %v702 = vsel %vm687, %v699, %v701
      %v703 = vrot.slane %v211, 3
      %v704 = vrot.slane %v212, 3
      %v705 = vsel %vm687, %v703, %v704
      %v706 = vrot.slane %v626, 3
      %v707 = vsel %vm687, %v704, %v706
      %v708 = vrot.slane %v213, 3
      %v709 = vrot.slane %v214, 3
      %v710 = vsel %vm687, %v708, %v709
      %v711 = vrot.slane %v627, 3
      %v712 = vsel %vm687, %v709, %v711
      %v713 = vrot.slane %v215, 3
      %v714 = vrot.slane %v216, 3
      %v715 = vsel %vm687, %v713, %v714
      %v716 = vrot.slane %v628, 3
      %v717 = vsel %vm687, %v714, %v716
      %v718 = vrot.slane %v217, 3
      %v719 = vrot.slane %v218, 3
      %v720 = vsel %vm687, %v718, %v719
      %v721 = vrot.slane %v629, 3
      %v722 = vsel %vm687, %v719, %v721
      %v723 = vrot.slane %v219, 3
      %v724 = vrot.slane %v220, 3
      %v725 = vsel %vm687, %v723, %v724
      %v726 = vrot.slane %v630, 3
      %v727 = vsel %vm687, %v724, %v726
      %v728 = vrot.slane %v221, 3
      %v729 = vrot.slane %v222, 3
      %v730 = vsel %vm687, %v728, %v729
      %v731 = vrot.slane %v631, 3
      %v732 = vsel %vm687, %v729, %v731
      %v733 = vrot.slane %v223, 3
      %v734 = vrot.slane %v224, 3
      %v735 = vsel %vm687, %v733, %v734
      %v736 = vrot.slane %v632, 3
      %v737 = vsel %vm687, %v734, %v736
      %v738 = vrot.slane %v225, 3
      %v739 = vrot.slane %v226, 3
      %v740 = vsel %vm687, %v738, %v739
      %v741 = vrot.slane %v633, 3
      %v742 = vsel %vm687, %v739, %v741
      %v743 = vrot.slane %v227, 3
      %v744 = vrot.slane %v228, 3
      %v745 = vsel %vm687, %v743, %v744
      %v746 = vrot.slane %v634, 3
      %v747 = vsel %vm687, %v744, %v746
      %v748 = vrot.slane %v229, 3
      %v749 = vrot.slane %v230, 3
      %v750 = vsel %vm687, %v748, %v749
      %v751 = vrot.slane %v635, 3
      %v752 = vsel %vm687, %v749, %v751
      %v753 = vrot.slane %v231, 3
      %v754 = vrot.slane %v232, 3
      %v755 = vsel %vm687, %v753, %v754
      %v756 = vrot.slane %v636, 3
      %v757 = vsel %vm687, %v754, %v756
      %v758 = vrot.slane %v233, 3
      %v759 = vrot.slane %v234, 3
      %v760 = vsel %vm687, %v758, %v759
      %v761 = vrot.slane %v637, 3
      %v762 = vsel %vm687, %v759, %v761
      %v763 = vrot.slane %v235, 3
      %v764 = vrot.slane %v236, 3
      %v765 = vsel %vm687, %v763, %v764
      %v766 = vrot.slane %v638, 3
      %v767 = vsel %vm687, %v764, %v766
      %v800 = vadd.f32 %v591, %v690
      %v801 = vadd.f32 %v592, %v692
      %v802 = vadd.f32 %v593, %v695
      %v803 = vadd.f32 %v594, %v697
      %v804 = vadd.f32 %v595, %v700
      %v805 = vadd.f32 %v596, %v702
      %v806 = vadd.f32 %v597, %v705
      %v807 = vadd.f32 %v598, %v707
      %v808 = vadd.f32 %v599, %v710
      %v809 = vadd.f32 %v600, %v712
      %v810 = vadd.f32 %v601, %v715
      %v811 = vadd.f32 %v602, %v717
      %v812 = vadd.f32 %v603, %v720
      %v813 = vadd.f32 %v604, %v722
      %v814 = vadd.f32 %v605, %v725
      %v815 = vadd.f32 %v606, %v727
      %v816 = vadd.f32 %v607, %v730
      %v817 = vadd.f32 %v608, %v732
      %v818 = vadd.f32 %v609, %v735
      %v819 = vadd.f32 %v610, %v737
      %v820 = vadd.f32 %v611, %v740
      %v821 = vadd.f32 %v612, %v742
      %v822 = vadd.f32 %v613, %v745
      %v823 = vadd.f32 %v614, %v747
      %v824 = vadd.f32 %v615, %v750
      %v825 = vadd.f32 %v616, %v752
      %v826 = vadd.f32 %v617, %v755
      %v827 = vadd.f32 %v618, %v757
      %v828 = vadd.f32 %v619, %v760
      %v829 = vadd.f32 %v620, %v762
      %v830 = vadd.f32 %v621, %v765
      %v831 = vadd.f32 %v622, %v767
      %v832 = vmul.f32 %v196, 0.046875
      %v833 = vmul.f32 %v197, 0.046875
      %v834 = vadd.f32 %v800, %v240
      %v835 = vadd.f32 %v801, %v241
      %v836 = vadd.f32 %v802, %v243
      %v837 = vadd.f32 %v803, %v244
      %v838 = vadd.f32 %v804, %v246
      %v839 = vadd.f32 %v805, %v247
      %v840 = vadd.f32 %v806, %v249
      %v841 = vadd.f32 %v807, %v250
      %v842 = vadd.f32 %v808, %v252
      %v843 = vadd.f32 %v809, %v253
      %v844 = vadd.f32 %v810, %v255
      %v845 = vadd.f32 %v811, %v256
      %v846 = vadd.f32 %v812, %v258
      %v847 = vadd.f32 %v813, %v259
      %v848 = vadd.f32 %v814, %v261
      %v849 = vadd.f32 %v815, %v262
      %v850 = vadd.f32 %v816, %v264
      %v851 = vadd.f32 %v817, %v265
      %v852 = vadd.f32 %v818, %v267
      %v853 = vadd.f32 %v819, %v268
      %v854 = vadd.f32 %v820, %v270
      %v855 = vadd.f32 %v821, %v271
      %v856 = vadd.f32 %v822, %v273
      %v857 = vadd.f32 %v823, %v274
      %v858 = vadd.f32 %v824, %v276
      %v859 = vadd.f32 %v825, %v277
      %v860 = vadd.f32 %v826, %v279
      %v861 = vadd.f32 %v827, %v280
      %v862 = vadd.f32 %v828, %v282
      %v863 = vadd.f32 %v829, %v283
      %v864 = vadd.f32 %v830, %v832
      %v865 = vadd.f32 %v831, %v833
      %v866 = vmul.f32 %v151, 0.140625
      %v867 = vmul.f32 %v152, 0.140625
      %v868 = vmul.f32 %v153, 0.140625
      %v869 = vmul.f32 %v154, 0.140625
      %v870 = vmul.f32 %v155, 0.140625
      %v871 = vmul.f32 %v156, 0.140625
      %v872 = vmul.f32 %v157, 0.140625
      %v873 = vmul.f32 %v158, 0.140625
      %v874 = vmul.f32 %v159, 0.140625
      %v875 = vmul.f32 %v160, 0.140625
      %v876 = vmul.f32 %v161, 0.140625
      %v877 = vmul.f32 %v162, 0.140625
      %v878 = vmul.f32 %v163, 0.140625
      %v879 = vmul.f32 %v164, 0.140625
      %v880 = vmul.f32 %v165, 0.140625
      %v881 = vmul.f32 %v166, 0.140625
      %v882 = vmul.f32 %v167, 0.140625
      %v883 = vmul.f32 %v168, 0.140625
      %v884 = vmul.f32 %v169, 0.140625
      %v885 = vmul.f32 %v170, 0.140625
      %v886 = vmul.f32 %v171, 0.140625
      %v887 = vmul.f32 %v172, 0.140625
      %v888 = vmul.f32 %v173, 0.140625
      %v889 = vmul.f32 %v174, 0.140625
      %v890 = vmul.f32 %v175, 0.140625
      %v891 = vmul.f32 %v176, 0.140625
      %v892 = vmul.f32 %v177, 0.140625
      %v893 = vmul.f32 %v178, 0.140625
      %v894 = vmul.f32 %v179, 0.140625
      %v895 = vmul.f32 %v180, 0.140625
      %v896 = vmul.f32 %v181, 0.140625
      %v897 = vmul.f32 %v182, 0.140625
      %v898 = vmul.f32 %v183, 0.140625
      %v899 = vmul.f32 %v184, 0.140625
      %v900 = vmul.f32 %v185, 0.140625
      %v901 = vmul.f32 %v186, 0.140625
      %v902 = vmul.f32 %v187, 0.140625
      %v903 = vmul.f32 %v188, 0.140625
      %v904 = vmul.f32 %v189, 0.140625
      %v905 = vmul.f32 %v190, 0.140625
      %v906 = vmul.f32 %v191, 0.140625
      %v907 = vmul.f32 %v192, 0.140625
      %v908 = vmul.f32 %v193, 0.140625
      %v909 = vmul.f32 %v194, 0.140625
      %v910 = vmul.f32 %v195, 0.140625
      %v911 = vmul.f32 %v196, 0.140625
      %v912 = vmul.f32 %v197, 0.140625
      %v913 = vmul.f32 %v198, 0.140625
      %v962 = vrot.slane %v866, 1
      %v963 = vrot.slane %v867, 1
      %v964 = vsel %vm333, %v962, %v963
      %v965 = vrot.slane %v868, 1
      %v966 = vsel %vm333, %v963, %v965
      %v967 = vrot.slane %v869, 1
      %v968 = vrot.slane %v870, 1
      %v969 = vsel %vm333, %v967, %v968
      %v970 = vrot.slane %v871, 1
      %v971 = vsel %vm333, %v968, %v970
      %v972 = vrot.slane %v872, 1
      %v973 = vrot.slane %v873, 1
      %v974 = vsel %vm333, %v972, %v973
      %v975 = vrot.slane %v874, 1
      %v976 = vsel %vm333, %v973, %v975
      %v977 = vrot.slane %v875, 1
      %v978 = vrot.slane %v876, 1
      %v979 = vsel %vm333, %v977, %v978
      %v980 = vrot.slane %v877, 1
      %v981 = vsel %vm333, %v978, %v980
      %v982 = vrot.slane %v878, 1
      %v983 = vrot.slane %v879, 1
      %v984 = vsel %vm333, %v982, %v983
      %v985 = vrot.slane %v880, 1
      %v986 = vsel %vm333, %v983, %v985
      %v987 = vrot.slane %v881, 1
      %v988 = vrot.slane %v882, 1
      %v989 = vsel %vm333, %v987, %v988
      %v990 = vrot.slane %v883, 1
      %v991 = vsel %vm333, %v988, %v990
      %v992 = vrot.slane %v884, 1
      %v993 = vrot.slane %v885, 1
      %v994 = vsel %vm333, %v992, %v993
      %v995 = vrot.slane %v886, 1
      %v996 = vsel %vm333, %v993, %v995
      %v997 = vrot.slane %v887, 1
      %v998 = vrot.slane %v888, 1
      %v999 = vsel %vm333, %v997, %v998
      %v1000 = vrot.slane %v889, 1
      %v1001 = vsel %vm333, %v998, %v1000
      %v1002 = vrot.slane %v890, 1
      %v1003 = vrot.slane %v891, 1
      %v1004 = vsel %vm333, %v1002, %v1003
      %v1005 = vrot.slane %v892, 1
      %v1006 = vsel %vm333, %v1003, %v1005
      %v1007 = vrot.slane %v893, 1
      %v1008 = vrot.slane %v894, 1
      %v1009 = vsel %vm333, %v1007, %v1008
      %v1010 = vrot.slane %v895, 1
      %v1011 = vsel %vm333, %v1008, %v1010
      %v1012 = vrot.slane %v896, 1
      %v1013 = vrot.slane %v897, 1
      %v1014 = vsel %vm333, %v1012, %v1013
      %v1015 = vrot.slane %v898, 1
      %v1016 = vsel %vm333, %v1013, %v1015
      %v1017 = vrot.slane %v899, 1
      %v1018 = vrot.slane %v900, 1
      %v1019 = vsel %vm333, %v1017, %v1018
      %v1020 = vrot.slane %v901, 1
      %v1021 = vsel %vm333, %v1018, %v1020
      %v1022 = vrot.slane %v902, 1
      %v1023 = vrot.slane %v903, 1
      %v1024 = vsel %vm333, %v1022, %v1023
      %v1025 = vrot.slane %v904, 1
      %v1026 = vsel %vm333, %v1023, %v1025
      %v1027 = vrot.slane %v905, 1
      %v1028 = vrot.slane %v906, 1
      %v1029 = vsel %vm333, %v1027, %v1028
      %v1030 = vrot.slane %v907, 1
      %v1031 = vsel %vm333, %v1028, %v1030
      %v1032 = vrot.slane %v908, 1
      %v1033 = vrot.slane %v909, 1
      %v1034 = vsel %vm333, %v1032, %v1033
      %v1035 = vrot.slane %v910, 1
      %v1036 = vsel %vm333, %v1033, %v1035
      %v1037 = vrot.slane %v911, 1
      %v1038 = vrot.slane %v912, 1
      %v1039 = vsel %vm333, %v1037, %v1038
      %v1040 = vrot.slane %v913, 1
      %v1041 = vsel %vm333, %v1038, %v1040
      %v1074 = vadd.f32 %v834, %v964
      %v1075 = vadd.f32 %v835, %v966
      %v1076 = vadd.f32 %v836, %v969
      %v1077 = vadd.f32 %v837, %v971
      %v1078 = vadd.f32 %v838, %v974
      %v1079 = vadd.f32 %v839, %v976
      %v1080 = vadd.f32 %v840, %v979
      %v1081 = vadd.f32 %v841, %v981
      %v1082 = vadd.f32 %v842, %v984
      %v1083 = vadd.f32 %v843, %v986
      %v1084 = vadd.f32 %v844, %v989
      %v1085 = vadd.f32 %v845, %v991
      %v1086 = vadd.f32 %v846, %v994
      %v1087 = vadd.f32 %v847, %v996
      %v1088 = vadd.f32 %v848, %v999
      %v1089 = vadd.f32 %v849, %v1001
      %v1090 = vadd.f32 %v850, %v1004
      %v1091 = vadd.f32 %v851, %v1006
      %v1092 = vadd.f32 %v852, %v1009
      %v1093 = vadd.f32 %v853, %v1011
      %v1094 = vadd.f32 %v854, %v1014
      %v1095 = vadd.f32 %v855, %v1016
      %v1096 = vadd.f32 %v856, %v1019
      %v1097 = vadd.f32 %v857, %v1021
      %v1098 = vadd.f32 %v858, %v1024
      %v1099 = vadd.f32 %v859, %v1026
      %v1100 = vadd.f32 %v860, %v1029
      %v1101 = vadd.f32 %v861, %v1031
      %v1102 = vadd.f32 %v862, %v1034
      %v1103 = vadd.f32 %v863, %v1036
      %v1104 = vadd.f32 %v864, %v1039
      %v1105 = vadd.f32 %v865, %v1041
      %v1106 = vrot.slane %v866, 2
      %v1107 = vrot.slane %v867, 2
      %v1108 = vsel %vm478, %v1106, %v1107
      %v1109 = vrot.slane %v868, 2
      %v1110 = vsel %vm478, %v1107, %v1109
      %v1111 = vrot.slane %v869, 2
      %v1112 = vrot.slane %v870, 2
      %v1113 = vsel %vm478, %v1111, %v1112
      %v1114 = vrot.slane %v871, 2
      %v1115 = vsel %vm478, %v1112, %v1114
      %v1116 = vrot.slane %v872, 2
      %v1117 = vrot.slane %v873, 2
      %v1118 = vsel %vm478, %v1116, %v1117
      %v1119 = vrot.slane %v874, 2
      %v1120 = vsel %vm478, %v1117, %v1119
      %v1121 = vrot.slane %v875, 2
      %v1122 = vrot.slane %v876, 2
      %v1123 = vsel %vm478, %v1121, %v1122
      %v1124 = vrot.slane %v877, 2
      %v1125 = vsel %vm478, %v1122, %v1124
      %v1126 = vrot.slane %v878, 2
      %v1127 = vrot.slane %v879, 2
      %v1128 = vsel %vm478, %v1126, %v1127
      %v1129 = vrot.slane %v880, 2
      %v1130 = vsel %vm478, %v1127, %v1129
      %v1131 = vrot.slane %v881, 2
      %v1132 = vrot.slane %v882, 2
      %v1133 = vsel %vm478, %v1131, %v1132
      %v1134 = vrot.slane %v883, 2
      %v1135 = vsel %vm478, %v1132, %v1134
      %v1136 = vrot.slane %v884, 2
      %v1137 = vrot.slane %v885, 2
      %v1138 = vsel %vm478, %v1136, %v1137
      %v1139 = vrot.slane %v886, 2
      %v1140 = vsel %vm478, %v1137, %v1139
      %v1141 = vrot.slane %v887, 2
      %v1142 = vrot.slane %v888, 2
      %v1143 = vsel %vm478, %v1141, %v1142
      %v1144 = vrot.slane %v889, 2
      %v1145 = vsel %vm478, %v1142, %v1144
      %v1146 = vrot.slane %v890, 2
      %v1147 = vrot.slane %v891, 2
      %v1148 = vsel %vm478, %v1146, %v1147
      %v1149 = vrot.slane %v892, 2
      %v1150 = vsel %vm478, %v1147, %v1149
      %v1151 = vrot.slane %v893, 2
      %v1152 = vrot.slane %v894, 2
      %v1153 = vsel %vm478, %v1151, %v1152
      %v1154 = vrot.slane %v895, 2
      %v1155 = vsel %vm478, %v1152, %v1154
      %v1156 = vrot.slane %v896, 2
      %v1157 = vrot.slane %v897, 2
      %v1158 = vsel %vm478, %v1156, %v1157
      %v1159 = vrot.slane %v898, 2
      %v1160 = vsel %vm478, %v1157, %v1159
      %v1161 = vrot.slane %v899, 2
      %v1162 = vrot.slane %v900, 2
      %v1163 = vsel %vm478, %v1161, %v1162
      %v1164 = vrot.slane %v901, 2
      %v1165 = vsel %vm478, %v1162, %v1164
      %v1166 = vrot.slane %v902, 2
      %v1167 = vrot.slane %v903, 2
      %v1168 = vsel %vm478, %v1166, %v1167
      %v1169 = vrot.slane %v904, 2
      %v1170 = vsel %vm478, %v1167, %v1169
      %v1171 = vrot.slane %v905, 2
      %v1172 = vrot.slane %v906, 2
      %v1173 = vsel %vm478, %v1171, %v1172
      %v1174 = vrot.slane %v907, 2
      %v1175 = vsel %vm478, %v1172, %v1174
      %v1176 = vrot.slane %v908, 2
      %v1177 = vrot.slane %v909, 2
      %v1178 = vsel %vm478, %v1176, %v1177
      %v1179 = vrot.slane %v910, 2
      %v1180 = vsel %vm478, %v1177, %v1179
      %v1181 = vrot.slane %v911, 2
      %v1182 = vrot.slane %v912, 2
      %v1183 = vsel %vm478, %v1181, %v1182
      %v1184 = vrot.slane %v913, 2
      %v1185 = vsel %vm478, %v1182, %v1184
      %v1218 = vadd.f32 %v1074, %v1108
      %v1219 = vadd.f32 %v1075, %v1110
      %v1220 = vadd.f32 %v1076, %v1113
      %v1221 = vadd.f32 %v1077, %v1115
      %v1222 = vadd.f32 %v1078, %v1118
      %v1223 = vadd.f32 %v1079, %v1120
      %v1224 = vadd.f32 %v1080, %v1123
      %v1225 = vadd.f32 %v1081, %v1125
      %v1226 = vadd.f32 %v1082, %v1128
      %v1227 = vadd.f32 %v1083, %v1130
      %v1228 = vadd.f32 %v1084, %v1133
      %v1229 = vadd.f32 %v1085, %v1135
      %v1230 = vadd.f32 %v1086, %v1138
      %v1231 = vadd.f32 %v1087, %v1140
      %v1232 = vadd.f32 %v1088, %v1143
      %v1233 = vadd.f32 %v1089, %v1145
      %v1234 = vadd.f32 %v1090, %v1148
      %v1235 = vadd.f32 %v1091, %v1150
      %v1236 = vadd.f32 %v1092, %v1153
      %v1237 = vadd.f32 %v1093, %v1155
      %v1238 = vadd.f32 %v1094, %v1158
      %v1239 = vadd.f32 %v1095, %v1160
      %v1240 = vadd.f32 %v1096, %v1163
      %v1241 = vadd.f32 %v1097, %v1165
      %v1242 = vadd.f32 %v1098, %v1168
      %v1243 = vadd.f32 %v1099, %v1170
      %v1244 = vadd.f32 %v1100, %v1173
      %v1245 = vadd.f32 %v1101, %v1175
      %v1246 = vadd.f32 %v1102, %v1178
      %v1247 = vadd.f32 %v1103, %v1180
      %v1248 = vadd.f32 %v1104, %v1183
      %v1249 = vadd.f32 %v1105, %v1185
      %v1250 = vmul.f32 %v198, 0.046875
      %v1254 = vrot.slane %v240, 3
      %v1255 = vrot.slane %v241, 3
      %v1256 = vsel %vm687, %v1254, %v1255
      %v1257 = vrot.slane %v242, 3
      %v1258 = vsel %vm687, %v1255, %v1257
      %v1259 = vrot.slane %v243, 3
      %v1260 = vrot.slane %v244, 3
      %v1261 = vsel %vm687, %v1259, %v1260
      %v1262 = vrot.slane %v245, 3
      %v1263 = vsel %vm687, %v1260, %v1262
      %v1264 = vrot.slane %v246, 3
      %v1265 = vrot.slane %v247, 3
      %v1266 = vsel %vm687, %v1264, %v1265
      %v1267 = vrot.slane %v248, 3
      %v1268 = vsel %vm687, %v1265, %v1267
      %v1269 = vrot.slane %v249, 3
      %v1270 = vrot.slane %v250, 3
      %v1271 = vsel %vm687, %v1269, %v1270
      %v1272 = vrot.slane %v251, 3
      %v1273 = vsel %vm687, %v1270, %v1272
      %v1274 = vrot.slane %v252, 3
      %v1275 = vrot.slane %v253, 3
      %v1276 = vsel %vm687, %v1274, %v1275
      %v1277 = vrot.slane %v254, 3
      %v1278 = vsel %vm687, %v1275, %v1277
      %v1279 = vrot.slane %v255, 3
      %v1280 = vrot.slane %v256, 3
      %v1281 = vsel %vm687, %v1279, %v1280
      %v1282 = vrot.slane %v257, 3
      %v1283 = vsel %vm687, %v1280, %v1282
      %v1284 = vrot.slane %v258, 3
      %v1285 = vrot.slane %v259, 3
      %v1286 = vsel %vm687, %v1284, %v1285
      %v1287 = vrot.slane %v260, 3
      %v1288 = vsel %vm687, %v1285, %v1287
      %v1289 = vrot.slane %v261, 3
      %v1290 = vrot.slane %v262, 3
      %v1291 = vsel %vm687, %v1289, %v1290
      %v1292 = vrot.slane %v263, 3
      %v1293 = vsel %vm687, %v1290, %v1292
      %v1294 = vrot.slane %v264, 3
      %v1295 = vrot.slane %v265, 3
      %v1296 = vsel %vm687, %v1294, %v1295
      %v1297 = vrot.slane %v266, 3
      %v1298 = vsel %vm687, %v1295, %v1297
      %v1299 = vrot.slane %v267, 3
      %v1300 = vrot.slane %v268, 3
      %v1301 = vsel %vm687, %v1299, %v1300
      %v1302 = vrot.slane %v269, 3
      %v1303 = vsel %vm687, %v1300, %v1302
      %v1304 = vrot.slane %v270, 3
      %v1305 = vrot.slane %v271, 3
      %v1306 = vsel %vm687, %v1304, %v1305
      %v1307 = vrot.slane %v272, 3
      %v1308 = vsel %vm687, %v1305, %v1307
      %v1309 = vrot.slane %v273, 3
      %v1310 = vrot.slane %v274, 3
      %v1311 = vsel %vm687, %v1309, %v1310
      %v1312 = vrot.slane %v275, 3
      %v1313 = vsel %vm687, %v1310, %v1312
      %v1314 = vrot.slane %v276, 3
      %v1315 = vrot.slane %v277, 3
      %v1316 = vsel %vm687, %v1314, %v1315
      %v1317 = vrot.slane %v278, 3
      %v1318 = vsel %vm687, %v1315, %v1317
      %v1319 = vrot.slane %v279, 3
      %v1320 = vrot.slane %v280, 3
      %v1321 = vsel %vm687, %v1319, %v1320
      %v1322 = vrot.slane %v281, 3
      %v1323 = vsel %vm687, %v1320, %v1322
      %v1324 = vrot.slane %v282, 3
      %v1325 = vrot.slane %v283, 3
      %v1326 = vsel %vm687, %v1324, %v1325
      %v1327 = vrot.slane %v284, 3
      %v1328 = vsel %vm687, %v1325, %v1327
      %v1329 = vrot.slane %v832, 3
      %v1330 = vrot.slane %v833, 3
      %v1331 = vsel %vm687, %v1329, %v1330
      %v1332 = vrot.slane %v1250, 3
      %v1333 = vsel %vm687, %v1330, %v1332
      %v1366 = vadd.f32 %v1218, %v1256
      %v1367 = vadd.f32 %v1219, %v1258
      %v1368 = vadd.f32 %v1220, %v1261
      %v1369 = vadd.f32 %v1221, %v1263
      %v1370 = vadd.f32 %v1222, %v1266
      %v1371 = vadd.f32 %v1223, %v1268
      %v1372 = vadd.f32 %v1224, %v1271
      %v1373 = vadd.f32 %v1225, %v1273
      %v1374 = vadd.f32 %v1226, %v1276
      %v1375 = vadd.f32 %v1227, %v1278
      %v1376 = vadd.f32 %v1228, %v1281
      %v1377 = vadd.f32 %v1229, %v1283
      %v1378 = vadd.f32 %v1230, %v1286
      %v1379 = vadd.f32 %v1231, %v1288
      %v1380 = vadd.f32 %v1232, %v1291
      %v1381 = vadd.f32 %v1233, %v1293
      %v1382 = vadd.f32 %v1234, %v1296
      %v1383 = vadd.f32 %v1235, %v1298
      %v1384 = vadd.f32 %v1236, %v1301
      %v1385 = vadd.f32 %v1237, %v1303
      %v1386 = vadd.f32 %v1238, %v1306
      %v1387 = vadd.f32 %v1239, %v1308
      %v1388 = vadd.f32 %v1240, %v1311
      %v1389 = vadd.f32 %v1241, %v1313
      %v1390 = vadd.f32 %v1242, %v1316
      %v1391 = vadd.f32 %v1243, %v1318
      %v1392 = vadd.f32 %v1244, %v1321
      %v1393 = vadd.f32 %v1245, %v1323
      %v1394 = vadd.f32 %v1246, %v1326
      %v1395 = vadd.f32 %v1247, %v1328
      %v1396 = vadd.f32 %v1248, %v1331
      %v1397 = vadd.f32 %v1249, %v1333
      %v1398 = vmul.f32 %v199, 0.046875
      %v1399 = vmul.f32 %v200, 0.046875
      %v1400 = vadd.f32 %v1366, %v243
      %v1401 = vadd.f32 %v1367, %v244
      %v1402 = vadd.f32 %v1368, %v246
      %v1403 = vadd.f32 %v1369, %v247
      %v1404 = vadd.f32 %v1370, %v249
      %v1405 = vadd.f32 %v1371, %v250
      %v1406 = vadd.f32 %v1372, %v252
      %v1407 = vadd.f32 %v1373, %v253
      %v1408 = vadd.f32 %v1374, %v255
      %v1409 = vadd.f32 %v1375, %v256
      %v1410 = vadd.f32 %v1376, %v258
      %v1411 = vadd.f32 %v1377, %v259
      %v1412 = vadd.f32 %v1378, %v261
      %v1413 = vadd.f32 %v1379, %v262
      %v1414 = vadd.f32 %v1380, %v264
      %v1415 = vadd.f32 %v1381, %v265
      %v1416 = vadd.f32 %v1382, %v267
      %v1417 = vadd.f32 %v1383, %v268
      %v1418 = vadd.f32 %v1384, %v270
      %v1419 = vadd.f32 %v1385, %v271
      %v1420 = vadd.f32 %v1386, %v273
      %v1421 = vadd.f32 %v1387, %v274
      %v1422 = vadd.f32 %v1388, %v276
      %v1423 = vadd.f32 %v1389, %v277
      %v1424 = vadd.f32 %v1390, %v279
      %v1425 = vadd.f32 %v1391, %v280
      %v1426 = vadd.f32 %v1392, %v282
      %v1427 = vadd.f32 %v1393, %v283
      %v1428 = vadd.f32 %v1394, %v832
      %v1429 = vadd.f32 %v1395, %v833
      %v1430 = vadd.f32 %v1396, %v1398
      %v1431 = vadd.f32 %v1397, %v1399
      %v1432 = vmul.f32 %v199, 0.140625
      %v1433 = vmul.f32 %v200, 0.140625
      %v1434 = vmul.f32 %v201, 0.140625
      %v1438 = vrot.slane %v1432, 1
      %v1439 = vrot.slane %v1433, 1
      %v1440 = vsel %vm333, %v1438, %v1439
      %v1441 = vrot.slane %v1434, 1
      %v1442 = vsel %vm333, %v1439, %v1441
      %v1445 = vadd.f32 %v1400, %v969
      %v1446 = vadd.f32 %v1401, %v971
      %v1447 = vadd.f32 %v1402, %v974
      %v1448 = vadd.f32 %v1403, %v976
      %v1449 = vadd.f32 %v1404, %v979
      %v1450 = vadd.f32 %v1405, %v981
      %v1451 = vadd.f32 %v1406, %v984
      %v1452 = vadd.f32 %v1407, %v986
      %v1453 = vadd.f32 %v1408, %v989
      %v1454 = vadd.f32 %v1409, %v991
      %v1455 = vadd.f32 %v1410, %v994
      %v1456 = vadd.f32 %v1411, %v996
      %v1457 = vadd.f32 %v1412, %v999
      %v1458 = vadd.f32 %v1413, %v1001
      %v1459 = vadd.f32 %v1414, %v1004
      %v1460 = vadd.f32 %v1415, %v1006
      %v1461 = vadd.f32 %v1416, %v1009
      %v1462 = vadd.f32 %v1417, %v1011
      %v1463 = vadd.f32 %v1418, %v1014
      %v1464 = vadd.f32 %v1419, %v1016
      %v1465 = vadd.f32 %v1420, %v1019
      %v1466 = vadd.f32 %v1421, %v1021
      %v1467 = vadd.f32 %v1422, %v1024
      %v1468 = vadd.f32 %v1423, %v1026
      %v1469 = vadd.f32 %v1424, %v1029
      %v1470 = vadd.f32 %v1425, %v1031
      %v1471 = vadd.f32 %v1426, %v1034
      %v1472 = vadd.f32 %v1427, %v1036
      %v1473 = vadd.f32 %v1428, %v1039
      %v1474 = vadd.f32 %v1429, %v1041
      %v1475 = vadd.f32 %v1430, %v1440
      %v1476 = vadd.f32 %v1431, %v1442
      %v1477 = vrot.slane %v1432, 2
      %v1478 = vrot.slane %v1433, 2
      %v1479 = vsel %vm478, %v1477, %v1478
      %v1480 = vrot.slane %v1434, 2
      %v1481 = vsel %vm478, %v1478, %v1480
      %v1484 = vadd.f32 %v1445, %v1113
      %v1485 = vadd.f32 %v1446, %v1115
      %v1486 = vadd.f32 %v1447, %v1118
      %v1487 = vadd.f32 %v1448, %v1120
      %v1488 = vadd.f32 %v1449, %v1123
      %v1489 = vadd.f32 %v1450, %v1125
      %v1490 = vadd.f32 %v1451, %v1128
      %v1491 = vadd.f32 %v1452, %v1130
      %v1492 = vadd.f32 %v1453, %v1133
      %v1493 = vadd.f32 %v1454, %v1135
      %v1494 = vadd.f32 %v1455, %v1138
      %v1495 = vadd.f32 %v1456, %v1140
      %v1496 = vadd.f32 %v1457, %v1143
      %v1497 = vadd.f32 %v1458, %v1145
      %v1498 = vadd.f32 %v1459, %v1148
      %v1499 = vadd.f32 %v1460, %v1150
      %v1500 = vadd.f32 %v1461, %v1153
      %v1501 = vadd.f32 %v1462, %v1155
      %v1502 = vadd.f32 %v1463, %v1158
      %v1503 = vadd.f32 %v1464, %v1160
      %v1504 = vadd.f32 %v1465, %v1163
      %v1505 = vadd.f32 %v1466, %v1165
      %v1506 = vadd.f32 %v1467, %v1168
      %v1507 = vadd.f32 %v1468, %v1170
      %v1508 = vadd.f32 %v1469, %v1173
      %v1509 = vadd.f32 %v1470, %v1175
      %v1510 = vadd.f32 %v1471, %v1178
      %v1511 = vadd.f32 %v1472, %v1180
      %v1512 = vadd.f32 %v1473, %v1183
      %v1513 = vadd.f32 %v1474, %v1185
      %v1514 = vadd.f32 %v1475, %v1479
      %v1515 = vadd.f32 %v1476, %v1481
      %v1516 = vmul.f32 %v201, 0.046875
      %v1520 = vrot.slane %v1398, 3
      %v1521 = vrot.slane %v1399, 3
      %v1522 = vsel %vm687, %v1520, %v1521
      %v1523 = vrot.slane %v1516, 3
      %v1524 = vsel %vm687, %v1521, %v1523
      %v1527 = vadd.f32 %v1484, %v1261
      %v1528 = vadd.f32 %v1485, %v1263
      %v1529 = vadd.f32 %v1486, %v1266
      %v1530 = vadd.f32 %v1487, %v1268
      %v1531 = vadd.f32 %v1488, %v1271
      %v1532 = vadd.f32 %v1489, %v1273
      %v1533 = vadd.f32 %v1490, %v1276
      %v1534 = vadd.f32 %v1491, %v1278
      %v1535 = vadd.f32 %v1492, %v1281
      %v1536 = vadd.f32 %v1493, %v1283
      %v1537 = vadd.f32 %v1494, %v1286
      %v1538 = vadd.f32 %v1495, %v1288
      %v1539 = vadd.f32 %v1496, %v1291
      %v1540 = vadd.f32 %v1497, %v1293
      %v1541 = vadd.f32 %v1498, %v1296
      %v1542 = vadd.f32 %v1499, %v1298
      %v1543 = vadd.f32 %v1500, %v1301
      %v1544 = vadd.f32 %v1501, %v1303
      %v1545 = vadd.f32 %v1502, %v1306
      %v1546 = vadd.f32 %v1503, %v1308
      %v1547 = vadd.f32 %v1504, %v1311
      %v1548 = vadd.f32 %v1505, %v1313
      %v1549 = vadd.f32 %v1506, %v1316
      %v1550 = vadd.f32 %v1507, %v1318
      %v1551 = vadd.f32 %v1508, %v1321
      %v1552 = vadd.f32 %v1509, %v1323
      %v1553 = vadd.f32 %v1510, %v1326
      %v1554 = vadd.f32 %v1511, %v1328
      %v1555 = vadd.f32 %v1512, %v1331
      %v1556 = vadd.f32 %v1513, %v1333
      %v1557 = vadd.f32 %v1514, %v1522
      %v1558 = vadd.f32 %v1515, %v1524
      %v1559 = vmul.f32 %v196, 0.015625
      %v1560 = vmul.f32 %v197, 0.015625
      %v1561 = vmul.f32 %v199, 0.015625
      %v1562 = vmul.f32 %v200, 0.015625
      %v1563 = vmul.f32 %v202, 0.015625
      %v1564 = vmul.f32 %v203, 0.015625
      %v1565 = vadd.f32 %v1527, %v211
      %v1566 = vadd.f32 %v1528, %v212
      %v1567 = vadd.f32 %v1529, %v213
      %v1568 = vadd.f32 %v1530, %v214
      %v1569 = vadd.f32 %v1531, %v215
      %v1570 = vadd.f32 %v1532, %v216
      %v1571 = vadd.f32 %v1533, %v217
      %v1572 = vadd.f32 %v1534, %v218
      %v1573 = vadd.f32 %v1535, %v219
      %v1574 = vadd.f32 %v1536, %v220
      %v1575 = vadd.f32 %v1537, %v221
      %v1576 = vadd.f32 %v1538, %v222
      %v1577 = vadd.f32 %v1539, %v223
      %v1578 = vadd.f32 %v1540, %v224
      %v1579 = vadd.f32 %v1541, %v225
      %v1580 = vadd.f32 %v1542, %v226
      %v1581 = vadd.f32 %v1543, %v227
      %v1582 = vadd.f32 %v1544, %v228
      %v1583 = vadd.f32 %v1545, %v229
      %v1584 = vadd.f32 %v1546, %v230
      %v1585 = vadd.f32 %v1547, %v231
      %v1586 = vadd.f32 %v1548, %v232
      %v1587 = vadd.f32 %v1549, %v233
      %v1588 = vadd.f32 %v1550, %v234
      %v1589 = vadd.f32 %v1551, %v235
      %v1590 = vadd.f32 %v1552, %v236
      %v1591 = vadd.f32 %v1553, %v1559
      %v1592 = vadd.f32 %v1554, %v1560
      %v1593 = vadd.f32 %v1555, %v1561
      %v1594 = vadd.f32 %v1556, %v1562
      %v1595 = vadd.f32 %v1557, %v1563
      %v1596 = vadd.f32 %v1558, %v1564
      %v1597 = vmul.f32 %v202, 0.046875
      %v1598 = vmul.f32 %v203, 0.046875
      %v1599 = vmul.f32 %v204, 0.046875
      %v1603 = vrot.slane %v832, 1
      %v1604 = vrot.slane %v833, 1
      %v1605 = vsel %vm333, %v1603, %v1604
      %v1606 = vrot.slane %v1250, 1
      %v1607 = vsel %vm333, %v1604, %v1606
      %v1608 = vrot.slane %v1398, 1
      %v1609 = vrot.slane %v1399, 1
      %v1610 = vsel %vm333, %v1608, %v1609
      %v1611 = vrot.slane %v1516, 1
      %v1612 = vsel %vm333, %v1609, %v1611
      %v1613 = vrot.slane %v1597, 1
      %v1614 = vrot.slane %v1598, 1
      %v1615 = vsel %vm333, %v1613, %v1614
      %v1616 = vrot.slane %v1599, 1
      %v1617 = vsel %vm333, %v1614, %v1616
      %v1624 = vadd.f32 %v1565, %v351
      %v1625 = vadd.f32 %v1566, %v353
      %v1626 = vadd.f32 %v1567, %v356
      %v1627 = vadd.f32 %v1568, %v358
      %v1628 = vadd.f32 %v1569, %v361
      %v1629 = vadd.f32 %v1570, %v363
      %v1630 = vadd.f32 %v1571, %v366
      %v1631 = vadd.f32 %v1572, %v368
      %v1632 = vadd.f32 %v1573, %v371
      %v1633 = vadd.f32 %v1574, %v373
      %v1634 = vadd.f32 %v1575, %v376
      %v1635 = vadd.f32 %v1576, %v378
      %v1636 = vadd.f32 %v1577, %v381
      %v1637 = vadd.f32 %v1578, %v383
      %v1638 = vadd.f32 %v1579, %v386
      %v1639 = vadd.f32 %v1580, %v388
      %v1640 = vadd.f32 %v1581, %v391
      %v1641 = vadd.f32 %v1582, %v393
      %v1642 = vadd.f32 %v1583, %v396
      %v1643 = vadd.f32 %v1584, %v398
      %v1644 = vadd.f32 %v1585, %v401
      %v1645 = vadd.f32 %v1586, %v403
      %v1646 = vadd.f32 %v1587, %v406
      %v1647 = vadd.f32 %v1588, %v408
      %v1648 = vadd.f32 %v1589, %v411
      %v1649 = vadd.f32 %v1590, %v413
      %v1650 = vadd.f32 %v1591, %v1605
      %v1651 = vadd.f32 %v1592, %v1607
      %v1652 = vadd.f32 %v1593, %v1610
      %v1653 = vadd.f32 %v1594, %v1612
      %v1654 = vadd.f32 %v1595, %v1615
      %v1655 = vadd.f32 %v1596, %v1617
      %v1656 = vrot.slane %v832, 2
      %v1657 = vrot.slane %v833, 2
      %v1658 = vsel %vm478, %v1656, %v1657
      %v1659 = vrot.slane %v1250, 2
      %v1660 = vsel %vm478, %v1657, %v1659
      %v1661 = vrot.slane %v1398, 2
      %v1662 = vrot.slane %v1399, 2
      %v1663 = vsel %vm478, %v1661, %v1662
      %v1664 = vrot.slane %v1516, 2
      %v1665 = vsel %vm478, %v1662, %v1664
      %v1666 = vrot.slane %v1597, 2
      %v1667 = vrot.slane %v1598, 2
      %v1668 = vsel %vm478, %v1666, %v1667
      %v1669 = vrot.slane %v1599, 2
      %v1670 = vsel %vm478, %v1667, %v1669
      %v1677 = vadd.f32 %v1624, %v496
      %v1678 = vadd.f32 %v1625, %v498
      %v1679 = vadd.f32 %v1626, %v501
      %v1680 = vadd.f32 %v1627, %v503
      %v1681 = vadd.f32 %v1628, %v506
      %v1682 = vadd.f32 %v1629, %v508
      %v1683 = vadd.f32 %v1630, %v511
      %v1684 = vadd.f32 %v1631, %v513
      %v1685 = vadd.f32 %v1632, %v516
      %v1686 = vadd.f32 %v1633, %v518
      %v1687 = vadd.f32 %v1634, %v521
      %v1688 = vadd.f32 %v1635, %v523
      %v1689 = vadd.f32 %v1636, %v526
      %v1690 = vadd.f32 %v1637, %v528
      %v1691 = vadd.f32 %v1638, %v531
      %v1692 = vadd.f32 %v1639, %v533
      %v1693 = vadd.f32 %v1640, %v536
      %v1694 = vadd.f32 %v1641, %v538
      %v1695 = vadd.f32 %v1642, %v541
      %v1696 = vadd.f32 %v1643, %v543
      %v1697 = vadd.f32 %v1644, %v546
      %v1698 = vadd.f32 %v1645, %v548
      %v1699 = vadd.f32 %v1646, %v551
      %v1700 = vadd.f32 %v1647, %v553
      %v1701 = vadd.f32 %v1648, %v556
      %v1702 = vadd.f32 %v1649, %v558
      %v1703 = vadd.f32 %v1650, %v1658
      %v1704 = vadd.f32 %v1651, %v1660
      %v1705 = vadd.f32 %v1652, %v1663
      %v1706 = vadd.f32 %v1653, %v1665
      %v1707 = vadd.f32 %v1654, %v1668
      %v1708 = vadd.f32 %v1655, %v1670
      %v1709 = vmul.f32 %v198, 0.015625
      %v1710 = vmul.f32 %v201, 0.015625
      %v1711 = vmul.f32 %v204, 0.015625
      %v1721 = vrot.slane %v1559, 3
      %v1722 = vrot.slane %v1560, 3
      %v1723 = vsel %vm687, %v1721, %v1722
      %v1724 = vrot.slane %v1709, 3
      %v1725 = vsel %vm687, %v1722, %v1724
      %v1726 = vrot.slane %v1561, 3
      %v1727 = vrot.slane %v1562, 3
      %v1728 = vsel %vm687, %v1726, %v1727
      %v1729 = vrot.slane %v1710, 3
      %v1730 = vsel %vm687, %v1727, %v1729
      %v1731 = vrot.slane %v1563, 3
      %v1732 = vrot.slane %v1564, 3
      %v1733 = vsel %vm687, %v1731, %v1732
      %v1734 = vrot.slane %v1711, 3
      %v1735 = vsel %vm687, %v1732, %v1734
      %v1742 = vadd.f32 %v1677, %v705
      %v1743 = vadd.f32 %v1678, %v707
      %v1744 = vadd.f32 %v1679, %v710
      %v1745 = vadd.f32 %v1680, %v712
      %v1746 = vadd.f32 %v1681, %v715
      %v1747 = vadd.f32 %v1682, %v717
      %v1748 = vadd.f32 %v1683, %v720
      %v1749 = vadd.f32 %v1684, %v722
      %v1750 = vadd.f32 %v1685, %v725
      %v1751 = vadd.f32 %v1686, %v727
      %v1752 = vadd.f32 %v1687, %v730
      %v1753 = vadd.f32 %v1688, %v732
      %v1754 = vadd.f32 %v1689, %v735
      %v1755 = vadd.f32 %v1690, %v737
      %v1756 = vadd.f32 %v1691, %v740
      %v1757 = vadd.f32 %v1692, %v742
      %v1758 = vadd.f32 %v1693, %v745
      %v1759 = vadd.f32 %v1694, %v747
      %v1760 = vadd.f32 %v1695, %v750
      %v1761 = vadd.f32 %v1696, %v752
      %v1762 = vadd.f32 %v1697, %v755
      %v1763 = vadd.f32 %v1698, %v757
      %v1764 = vadd.f32 %v1699, %v760
      %v1765 = vadd.f32 %v1700, %v762
      %v1766 = vadd.f32 %v1701, %v765
      %v1767 = vadd.f32 %v1702, %v767
      %v1768 = vadd.f32 %v1703, %v1723
      %v1769 = vadd.f32 %v1704, %v1725
      %v1770 = vadd.f32 %v1705, %v1728
      %v1771 = vadd.f32 %v1706, %v1730
      %v1772 = vadd.f32 %v1707, %v1733
      %v1773 = vadd.f32 %v1708, %v1735
      %vm1774 = vcmask 31744
      %1775 = vst.msk [vmem:[%s147] sm:$0xff] %vm1774, %v1742
      %1776 = vst.msk [vmem:[%s147 + $0x8] sm:$0xff] %vm1774, %v1743
      %1777 = vst.msk [vmem:[%s147 + $0x10] sm:$0xff] %vm1774, %v1744
      %1778 = vst.msk [vmem:[%s147 + $0x18] sm:$0xff] %vm1774, %v1745
      %1779 = vst.msk [vmem:[%s147 + $0x20] sm:$0xff] %vm1774, %v1746
      %1780 = vst.msk [vmem:[%s147 + $0x28] sm:$0xff] %vm1774, %v1747
      %1781 = vst.msk [vmem:[%s147 + $0x30] sm:$0xff] %vm1774, %v1748
      %1782 = vst.msk [vmem:[%s147 + $0x38] sm:$0xff] %vm1774, %v1749
      %1783 = vst.msk [vmem:[%s147 + $0x40] sm:$0xff] %vm1774, %v1750
      %1784 = vst.msk [vmem:[%s147 + $0x48] sm:$0xff] %vm1774, %v1751
      %1785 = vst.msk [vmem:[%s147 + $0x50] sm:$0xff] %vm1774, %v1752
      %1786 = vst.msk [vmem:[%s147 + $0x58] sm:$0xff] %vm1774, %v1753
      %1787 = vst.msk [vmem:[%s147 + $0x60] sm:$0xff] %vm1774, %v1754
      %1788 = vst.msk [vmem:[%s147 + $0x68] sm:$0xff] %vm1774, %v1755
      %1789 = vst.msk [vmem:[%s147 + $0x70] sm:$0xff] %vm1774, %v1756
      %1790 = vst.msk [vmem:[%s147 + $0x78] sm:$0xff] %vm1774, %v1757
      %1791 = vst.msk [vmem:[%s147 + $0x80] sm:$0xff] %vm1774, %v1758
      %1792 = vst.msk [vmem:[%s147 + $0x88] sm:$0xff] %vm1774, %v1759
      %1793 = vst.msk [vmem:[%s147 + $0x90] sm:$0xff] %vm1774, %v1760
      %1794 = vst.msk [vmem:[%s147 + $0x98] sm:$0xff] %vm1774, %v1761
      %1795 = vst.msk [vmem:[%s147 + $0xa0] sm:$0xff] %vm1774, %v1762
      %1796 = vst.msk [vmem:[%s147 + $0xa8] sm:$0xff] %vm1774, %v1763
      %1797 = vst.msk [vmem:[%s147 + $0xb0] sm:$0xff] %vm1774, %v1764
      %1798 = vst.msk [vmem:[%s147 + $0xb8] sm:$0xff] %vm1774, %v1765
      %1799 = vst.msk [vmem:[%s147 + $0xc0] sm:$0xff] %vm1774, %v1766
      %1800 = vst.msk [vmem:[%s147 + $0xc8] sm:$0xff] %vm1774, %v1767
      %1801 = vst.msk [vmem:[%s147 + $0xd0] sm:$0xff] %vm1774, %v1768
      %1802 = vst.msk [vmem:[%s147 + $0xd8] sm:$0xff] %vm1774, %v1769
      %1803 = vst.msk [vmem:[%s147 + $0xe0] sm:$0xff] %vm1774, %v1770
      %1804 = vst.msk [vmem:[%s147 + $0xe8] sm:$0xff] %vm1774, %v1771
      %1805 = vst.msk [vmem:[%s147 + $0xf0] sm:$0xff] %vm1774, %v1772
      %1806 = vst.msk [vmem:[%s147 + $0xf8] sm:$0xff] %vm1774, %v1773
      %p1807 = scmp.lt.s32.totalorder %s16, 1
      %s1808 = scalar_select %p1807, %s16, 1
      %p1809 = scmp.lt.s32.totalorder %s17, 0
      %s1810 = scalar_select %p1809, %s17, 0
      %s1811 = smul.addr %s1808, 32
      %s1812 = sadd.s32 %s1810, %s1811
      %s1813 = smul.addr %s1812, 8
      %s1814 = scalar_lea.vmem %s1, %s1813
      // Predicated region
      $region25: #{tpu_custom_call.1} parent=23 // pred_check
        %p1815 = pneg %p72
      $region26: #{tpu_custom_call.1} parent=23 // pred_check_branch
        %1817 = sbr.rel (%p1815) target = $region28
      $region27: #{tpu_custom_call.1} parent=23 // pred_region
        _
      $region28: #{tpu_custom_call.1} parent=23 // pred_fallthru
        _
    $region24: #{tpu_custom_call.1} parent=5 // pred_fallthru
      _
    %p1818 = scmp.le.s32.totalorder 2, %s7
    // Predicated region
    $region29: #{tpu_custom_call.1} parent=5 // pred_check
      %p1819 = pneg %p1818
    $region30: #{tpu_custom_call.1} parent=5 // pred_check_branch
      %1821 = sbr.rel (%p1819) target = $region32
    $region31: #{tpu_custom_call.1} parent=5 // pred_region
      %s1822 = ssub.s32 %s7, 2
      // Predicated region
      $region33: #{tpu_custom_call.1} parent=31 // pred_check
        %p1823 = pneg %p78
      $region34: #{tpu_custom_call.1} parent=31 // pred_check_branch
        %1825 = sbr.rel (%p1823) target = $region36
      $region35: #{tpu_custom_call.1} parent=31 // pred_region
        %p1826 = scmp.lt.s32.totalorder %s18, 1
        %s1827 = scalar_select %p1826, %s18, 1
        %p1828 = scmp.lt.s32.totalorder %s19, 0
        %s1829 = scalar_select %p1828, %s19, 0
        %s1830 = smul.addr %s1827, 32
        %s1831 = sadd.s32 %s1829, %s1830
        %s1832 = smul.addr %s1831, 8
        %s1833 = scalar_lea.vmem %s1, %s1832
      $region36: #{tpu_custom_call.1} parent=31 // pred_fallthru
        _
    $region32: #{tpu_custom_call.1} parent=5 // pred_fallthru
      _
  $region6: #{tpu_custom_call.1} parent=0 // loop_footer
    %s11 = sadd.s32 1, %s7
  $region7: #{tpu_custom_call.1} parent=0 // loop_footer_branch
    %6 = sbr.rel target = $region3
  $region8: #{tpu_custom_call.1} parent=0 // loop_exit
    _

</llo_original>
